<compile_context>
chip_gen: v7x
topology: tpu7x:2x2x1
jax: 0.10.0
libtpu: 0.0.40
codegen_flags: <defaults>
</compile_context>

<pallas_src>
import functools

import jax
import jax.numpy as jnp
import numpy as np
from jax.experimental import pallas as pl
from jax.experimental.pallas import tpu as pltpu


def _round_up(x, m):
    return (x + m - 1) // m * m


def joint_direction_loss_kernel(y_ref, z_ref, w_ref, o_ref, acc_ref, *,
                                n_inner, rows_total, inv_total,
                                seg_width, seg_count):
    i = pl.program_id(0)          # outer axis: "parallel" (one partial per block)
    j = pl.program_id(1)          # inner axis: "arbitrary" (reduction)

    @pl.when(j == 0)
    def _init():
        acc_ref[...] = jnp.zeros(acc_ref.shape, acc_ref.dtype)

    y = y_ref[...].astype(jnp.float32)        # (tr, width)
    z = z_ref[...].astype(jnp.float32)        # (tr, width)
    tr, width = z.shape

    # ---- per-(original-)row max for a numerically stable softmax -------------
    if seg_count > 1:
        # Lane-packed layout: each seg_width-wide lane segment is one original
        # row.  Exact segmented max via an XOR butterfly of cyclic lane rolls
        # (XLU) -- every lane ends up holding the max of its own segment.
        lane = jax.lax.broadcasted_iota(jnp.int32, (1, width), 1)
        m = z
        s = 1
        while s < seg_width:
            hi = pltpu.roll(m, width - s, axis=1)   # hi[l] = m[l + s]
            lo = pltpu.roll(m, s, axis=1)           # lo[l] = m[l - s]
            m = jnp.maximum(m, jnp.where((lane & s) == 0, hi, lo))
            s *= 2
    else:
        m = jnp.max(z, axis=-1, keepdims=True)      # (tr, 1)

    p = jnp.exp(z - m)                              # (tr, width)

    # ---- segmented sums over each seg_width lane segment on the idle MXU -----
    w = w_ref[...]                                  # (width, seg_count) 0/1 matrix
    denom = jnp.dot(p, w, preferred_element_type=jnp.float32,
                    precision=jax.lax.Precision.HIGHEST)     # (tr, seg_count)
    num = jnp.dot(y * p, w, preferred_element_type=jnp.float32,
                  precision=jax.lax.Precision.HIGHEST)       # (tr, seg_count)
    row = num / denom              # per original row: sum_c y * softmax(z)

    # ---- mask ragged / clamped rows (replaces wrapper-side jnp.pad) ----------
    row_start = (i * n_inner + j) * tr
    ridx = jax.lax.broadcasted_iota(jnp.int32, (tr, 1), 0) + row_start
    valid = ridx < rows_total                       # (tr, 1)
    acc_ref[...] += jnp.where(valid, row, 0.0)      # elementwise VPU accumulate

    @pl.when(j == pl.num_programs(1) - 1)
    def _finalize():
        tot = jnp.sum(acc_ref[...], axis=1, keepdims=True)   # (tr, 1)
        tot = jnp.sum(tot, axis=0, keepdims=True)            # (1, 1)
        o_ref[...] = (tot * inv_total).reshape(1, 1, 1)


def joint_direction_prediction_loss(y, yhat, *,
                                    target_block_bytes=4 * 1024 * 1024,
                                    vmem_budget_bytes=12 * 1024 * 1024,
                                    max_outer=8):
    """Pallas forward of JointDirectionPredictionLoss. y, yhat: (N, V, C)."""
    assert y.shape == yhat.shape and y.ndim == 3
    N, V, C = y.shape
    R = N * V

    # Lane packing (C < 128, 128 % C == 0, R % k == 0): k rows per 128-lane row.
    k = 128 // C if (C < 128 and 128 % C == 0) else 0
    if k > 1 and R % k == 0:
        seg_count, seg_width = k, C
        rows, width = R // k, C * k
    else:
        seg_count, seg_width = 1, C
        rows, width = R, C

    # Contiguous reshapes only -> no HBM copy.
    y2 = y.reshape(rows, width)
    z2 = yhat.reshape(rows, width)

    # Segment-sum matrix for the MXU: w[c, s] = 1 iff lane c belongs to segment s.
    seg_of_lane = np.arange(width) // seg_width
    w = jnp.asarray((seg_of_lane[:, None] == np.arange(seg_count)[None, :])
                    .astype(np.float32))

    # ---- tile sizing: ~target_block_bytes of HBM per grid step, VMEM capped ---
    in_bytes = y2.dtype.itemsize + z2.dtype.itemsize
    lane_w = _round_up(width, 128)
    buf_bytes = 2 * lane_w * in_bytes               # 2 buffers x both inputs, per row
    tr = max(8, target_block_bytes // max(1, width * in_bytes))
    tr = min(tr, max(8, vmem_budget_bytes // max(1, buf_bytes)))
    tr = max(8, (tr // 8) * 8)
    if rows <= tr:
        tr = rows                                   # single row-block (full dim)
    n_blocks = pl.cdiv(rows, tr)

    # ---- grid: (outer "parallel", inner "arbitrary") --------------------------
    n_outer = max(1, min(max_outer, n_blocks))
    n_inner = pl.cdiv(n_blocks, n_outer)
    n_outer = pl.cdiv(n_blocks, n_inner)            # trim empty outer blocks

    def in_map(i, j):
        # Clamp fully out-of-range block indices to the last real block; those
        # rows are masked out inside the kernel.
        return (jnp.minimum(i * n_inner + j, n_blocks - 1), 0)

    kernel = functools.partial(
        joint_direction_loss_kernel,
        n_inner=n_inner,
        rows_total=rows,
        inv_total=1.0 / float(R),
        seg_width=seg_width,
        seg_count=seg_count,
    )

    partials = pl.pallas_call(
        kernel,
        out_shape=jax.ShapeDtypeStruct((n_outer, 1, 1), jnp.float32),
        grid_spec=pltpu.PrefetchScalarGridSpec(
            num_scalar_prefetch=0,
            grid=(n_outer, n_inner),
            in_specs=[
                pl.BlockSpec((tr, width), in_map),
                pl.BlockSpec((tr, width), in_map),
                pl.BlockSpec((width, seg_count), lambda i, j: (0, 0)),
            ],
            out_specs=pl.BlockSpec((1, 1, 1), lambda i, j: (i, 0, 0)),
            scratch_shapes=[pltpu.VMEM((tr, seg_count), jnp.float32)],
        ),
        compiler_params=pltpu.CompilerParams(
            dimension_semantics=("parallel", "arbitrary"),
            vmem_limit_bytes=32 * 1024 * 1024,
        ),
    )(y2, z2, w)

    # Each partial is already scaled by 1/(N*V); just add them up.
    return jnp.sum(partials)


def joint_direction_prediction_loss_ref(y, yhat):
    """Plain-JAX reference reproducing the PyTorch forward."""
    p = jax.nn.softmax(yhat, axis=2)
    return jnp.mean(jnp.einsum('nvc,nvc->nv', y, p))


if __name__ == "__main__":
    key = jax.random.PRNGKey(0)

    cases = [
        # (shape, wrapper kwargs)
        ((2, 16, 32), {}),                                   # packed, single block
        ((25, 40, 32), dict(target_block_bytes=56 * 1024,    # packed, multi-block,
                            max_outer=2)),                   # ragged tail + clamped block
        ((3, 25, 32), {}),                                   # R % 4 != 0 -> unpacked fallback
    ]

    for idx, (shape, kw) in enumerate(cases):
        ky, kz = jax.random.split(jax.random.fold_in(key, idx))
        y = jax.random.normal(ky, shape, dtype=jnp.float32)
        yhat = jax.random.normal(kz, shape, dtype=jnp.float32)

        out = jax.block_until_ready(joint_direction_prediction_loss(y, yhat, **kw))
        ref = joint_direction_prediction_loss_ref(y, yhat)
        np.testing.assert_allclose(np.asarray(out), np.asarray(ref),
                                   rtol=1e-5, atol=2e-6)

    print("KERNEL_OK")
</pallas_src>

<mosaic_0001>
module attributes {stable_mosaic.version = 11 : i64} {
  func.func @joint_direction_loss_kernel(%arg0: i32, %arg1: i32, %arg2: memref<8x128xf32, #tpu.memory_space<vmem>>, %arg3: memref<8x128xf32, #tpu.memory_space<vmem>>, %arg4: memref<128x4xf32, #tpu.memory_space<vmem>>, %arg5: memref<1x1x1xf32, #tpu.memory_space<vmem>>, %arg6: memref<8x4xf32, #tpu.memory_space<vmem>>) attributes {dimension_semantics = [#tpu.dimension_semantics<parallel>, #tpu.dimension_semantics<arbitrary>], iteration_bounds = array<i64: 1, 1>, scalar_prefetch = 0 : i64, scratch_operands = 1 : i64, tpu.core_type = #tpu.core_type<tc>, window_params = [{transform_indices = @transform_0, window_bounds = array<i64: 8, 128>}, {transform_indices = @transform_1, window_bounds = array<i64: 8, 128>}, {pipeline_mode = #tpu.pipeline_mode<synchronous>, transform_indices = @transform_2, window_bounds = array<i64: 128, 4>}, {transform_indices = @transform_3, window_bounds = array<i64: 1, 1, 1>}]} {
    %c0_i32 = arith.constant 0 : i32
    %0 = arith.cmpi eq, %arg1, %c0_i32 : i32
    %1 = arith.extui %0 : i1 to i32
    %c0_i32_0 = arith.constant 0 : i32
    %2 = arith.cmpi ne, %1, %c0_i32_0 : i32
    scf.if %2 {
      %cst_27 = arith.constant 0.000000e+00 : f32
      %81 = vector.broadcast %cst_27 : f32 to vector<8x4xf32>
      %c0_28 = arith.constant 0 : index
      %c0_29 = arith.constant 0 : index
      %82 = vector.load %arg6[%c0_28, %c0_29] : memref<8x4xf32, #tpu.memory_space<vmem>>, vector<8x4xf32>
      tpu.vector_store %arg6[%c0_28, %c0_29], %81 {strides = array<i32>} : memref<8x4xf32, #tpu.memory_space<vmem>>, vector<8x4xf32>,
    } else {
    }
    %c0 = arith.constant 0 : index
    %c0_1 = arith.constant 0 : index
    %3 = vector.load %arg2[%c0, %c0_1] : memref<8x128xf32, #tpu.memory_space<vmem>>, vector<8x128xf32>
    %c0_2 = arith.constant 0 : index
    %c0_3 = arith.constant 0 : index
    %4 = vector.load %arg3[%c0_2, %c0_3] : memref<8x128xf32, #tpu.memory_space<vmem>>, vector<8x128xf32>
    %5 = tpu.iota {dimensions = array<i32: 1>} : vector<1x128xi32>
    %c127_i32 = arith.constant 127 : i32
    %6 = tpu.dynamic_rotate %4 by %c127_i32 dim 1 : vector<8x128xf32>, i32 -> vector<8x128xf32>
    %c1_i32 = arith.constant 1 : i32
    %7 = tpu.dynamic_rotate %4 by %c1_i32 dim 1 : vector<8x128xf32>, i32 -> vector<8x128xf32>
    %c1_i32_4 = arith.constant 1 : i32
    %8 = vector.broadcast %c1_i32_4 : i32 to vector<1x128xi32>
    %9 = arith.andi %5, %8 : vector<1x128xi32>
    %c0_i32_5 = arith.constant 0 : i32
    %10 = vector.broadcast %c0_i32_5 : i32 to vector<1x128xi32>
    %11 = arith.cmpi eq, %9, %10 : vector<1x128xi32>
    %12 = vector.shape_cast %11 : vector<1x128xi1> to vector<1x128xi1>
    %13 = vector.broadcast %12 : vector<1x128xi1> to vector<8x128xi1>
    %14 = arith.select %13, %6, %7 : vector<8x128xi1>, vector<8x128xf32>
    %15 = arith.maximumf %4, %14 : vector<8x128xf32>
    %c126_i32 = arith.constant 126 : i32
    %16 = tpu.dynamic_rotate %15 by %c126_i32 dim 1 : vector<8x128xf32>, i32 -> vector<8x128xf32>
    %c2_i32 = arith.constant 2 : i32
    %17 = tpu.dynamic_rotate %15 by %c2_i32 dim 1 : vector<8x128xf32>, i32 -> vector<8x128xf32>
    %c2_i32_6 = arith.constant 2 : i32
    %18 = vector.broadcast %c2_i32_6 : i32 to vector<1x128xi32>
    %19 = arith.andi %5, %18 : vector<1x128xi32>
    %c0_i32_7 = arith.constant 0 : i32
    %20 = vector.broadcast %c0_i32_7 : i32 to vector<1x128xi32>
    %21 = arith.cmpi eq, %19, %20 : vector<1x128xi32>
    %22 = vector.shape_cast %21 : vector<1x128xi1> to vector<1x128xi1>
    %23 = vector.broadcast %22 : vector<1x128xi1> to vector<8x128xi1>
    %24 = arith.select %23, %16, %17 : vector<8x128xi1>, vector<8x128xf32>
    %25 = arith.maximumf %15, %24 : vector<8x128xf32>
    %c124_i32 = arith.constant 124 : i32
    %26 = tpu.dynamic_rotate %25 by %c124_i32 dim 1 : vector<8x128xf32>, i32 -> vector<8x128xf32>
    %c4_i32 = arith.constant 4 : i32
    %27 = tpu.dynamic_rotate %25 by %c4_i32 dim 1 : vector<8x128xf32>, i32 -> vector<8x128xf32>
    %c4_i32_8 = arith.constant 4 : i32
    %28 = vector.broadcast %c4_i32_8 : i32 to vector<1x128xi32>
    %29 = arith.andi %5, %28 : vector<1x128xi32>
    %c0_i32_9 = arith.constant 0 : i32
    %30 = vector.broadcast %c0_i32_9 : i32 to vector<1x128xi32>
    %31 = arith.cmpi eq, %29, %30 : vector<1x128xi32>
    %32 = vector.shape_cast %31 : vector<1x128xi1> to vector<1x128xi1>
    %33 = vector.broadcast %32 : vector<1x128xi1> to vector<8x128xi1>
    %34 = arith.select %33, %26, %27 : vector<8x128xi1>, vector<8x128xf32>
    %35 = arith.maximumf %25, %34 : vector<8x128xf32>
    %c120_i32 = arith.constant 120 : i32
    %36 = tpu.dynamic_rotate %35 by %c120_i32 dim 1 : vector<8x128xf32>, i32 -> vector<8x128xf32>
    %c8_i32 = arith.constant 8 : i32
    %37 = tpu.dynamic_rotate %35 by %c8_i32 dim 1 : vector<8x128xf32>, i32 -> vector<8x128xf32>
    %c8_i32_10 = arith.constant 8 : i32
    %38 = vector.broadcast %c8_i32_10 : i32 to vector<1x128xi32>
    %39 = arith.andi %5, %38 : vector<1x128xi32>
    %c0_i32_11 = arith.constant 0 : i32
    %40 = vector.broadcast %c0_i32_11 : i32 to vector<1x128xi32>
    %41 = arith.cmpi eq, %39, %40 : vector<1x128xi32>
    %42 = vector.shape_cast %41 : vector<1x128xi1> to vector<1x128xi1>
    %43 = vector.broadcast %42 : vector<1x128xi1> to vector<8x128xi1>
    %44 = arith.select %43, %36, %37 : vector<8x128xi1>, vector<8x128xf32>
    %45 = arith.maximumf %35, %44 : vector<8x128xf32>
    %c112_i32 = arith.constant 112 : i32
    %46 = tpu.dynamic_rotate %45 by %c112_i32 dim 1 : vector<8x128xf32>, i32 -> vector<8x128xf32>
    %c16_i32 = arith.constant 16 : i32
    %47 = tpu.dynamic_rotate %45 by %c16_i32 dim 1 : vector<8x128xf32>, i32 -> vector<8x128xf32>
    %c16_i32_12 = arith.constant 16 : i32
    %48 = vector.broadcast %c16_i32_12 : i32 to vector<1x128xi32>
    %49 = arith.andi %5, %48 : vector<1x128xi32>
    %c0_i32_13 = arith.constant 0 : i32
    %50 = vector.broadcast %c0_i32_13 : i32 to vector<1x128xi32>
    %51 = arith.cmpi eq, %49, %50 : vector<1x128xi32>
    %52 = vector.shape_cast %51 : vector<1x128xi1> to vector<1x128xi1>
    %53 = vector.broadcast %52 : vector<1x128xi1> to vector<8x128xi1>
    %54 = arith.select %53, %46, %47 : vector<8x128xi1>, vector<8x128xf32>
    %55 = arith.maximumf %45, %54 : vector<8x128xf32>
    %56 = arith.subf %4, %55 : vector<8x128xf32>
    %57 = math.exp %56 : vector<8x128xf32>
    %c0_14 = arith.constant 0 : index
    %c0_15 = arith.constant 0 : index
    %58 = vector.load %arg4[%c0_14, %c0_15] : memref<128x4xf32, #tpu.memory_space<vmem>>, vector<128x4xf32>
    %cst = arith.constant dense<0.000000e+00> : vector<8x4xf32>
    %59 = tpu.matmul %57, %58, %cst {dimension_numbers = #tpu.dot_dimension_numbers<[1], [0], [0], [1], [0, 0, 1, 1], [], []>, precision = #tpu.contract_precision<fp32>} : vector<8x128xf32>, vector<128x4xf32>, vector<8x4xf32> -> vector<8x4xf32>
    %60 = arith.mulf %3, %57 : vector<8x128xf32>
    %cst_16 = arith.constant dense<0.000000e+00> : vector<8x4xf32>
    %61 = tpu.matmul %60, %58, %cst_16 {dimension_numbers = #tpu.dot_dimension_numbers<[1], [0], [0], [1], [0, 0, 1, 1], [], []>, precision = #tpu.contract_precision<fp32>} : vector<8x128xf32>, vector<128x4xf32>, vector<8x4xf32> -> vector<8x4xf32>
    %62 = arith.divf %61, %59 : vector<8x4xf32>
    %c1_i32_17 = arith.constant 1 : i32
    %63 = arith.muli %arg0, %c1_i32_17 : i32
    %64 = arith.addi %63, %arg1 : i32
    %c8_i32_18 = arith.constant 8 : i32
    %65 = arith.muli %64, %c8_i32_18 : i32
    %66 = tpu.iota {dimensions = array<i32: 0>} : vector<8x1xi32>
    %67 = vector.broadcast %65 : i32 to vector<8x1xi32>
    %68 = arith.addi %66, %67 : vector<8x1xi32>
    %c8_i32_19 = arith.constant 8 : i32
    %69 = vector.broadcast %c8_i32_19 : i32 to vector<8x1xi32>
    %70 = arith.cmpi slt, %68, %69 : vector<8x1xi32>
    %c0_20 = arith.constant 0 : index
    %c0_21 = arith.constant 0 : index
    %71 = vector.load %arg6[%c0_20, %c0_21] : memref<8x4xf32, #tpu.memory_space<vmem>>, vector<8x4xf32>
    %cst_22 = arith.constant 0.000000e+00 : f32
    %72 = vector.shape_cast %70 : vector<8x1xi1> to vector<8x1xi1>
    %73 = vector.broadcast %72 : vector<8x1xi1> to vector<8x4xi1>
    %74 = vector.broadcast %cst_22 : f32 to vector<8x4xf32>
    %75 = arith.select %73, %62, %74 : vector<8x4xi1>, vector<8x4xf32>
    %76 = arith.addf %71, %75 : vector<8x4xf32>
    %c0_23 = arith.constant 0 : index
    %c0_24 = arith.constant 0 : index
    %77 = vector.load %arg6[%c0_23, %c0_24] : memref<8x4xf32, #tpu.memory_space<vmem>>, vector<8x4xf32>
    tpu.vector_store %arg6[%c0_23, %c0_24], %76 {strides = array<i32>} : memref<8x4xf32, #tpu.memory_space<vmem>>, vector<8x4xf32>,
    %c0_i32_25 = arith.constant 0 : i32
    %78 = arith.cmpi eq, %arg1, %c0_i32_25 : i32
    %79 = arith.extui %78 : i1 to i32
    %c0_i32_26 = arith.constant 0 : i32
    %80 = arith.cmpi ne, %79, %c0_i32_26 : i32
    scf.if %80 {
      %c0_27 = arith.constant 0 : index
      %c0_28 = arith.constant 0 : index
      %81 = vector.load %arg6[%c0_27, %c0_28] : memref<8x4xf32, #tpu.memory_space<vmem>>, vector<8x4xf32>
      %cst_29 = arith.constant dense<0.000000e+00> : vector<8xf32>
      %82 = vector.multi_reduction <add>, %81, %cst_29 [1] : vector<8x4xf32> to vector<8xf32>
      %83 = vector.shape_cast %82 : vector<8xf32> to vector<8x1xf32>
      %cst_30 = arith.constant dense<0.000000e+00> : vector<1xf32>
      %84 = vector.multi_reduction <add>, %83, %cst_30 [0] : vector<8x1xf32> to vector<1xf32>
      %85 = vector.shape_cast %84 : vector<1xf32> to vector<1x1xf32>
      %cst_31 = arith.constant 3.125000e-02 : f32
      %86 = vector.broadcast %cst_31 : f32 to vector<1x1xf32>
      %87 = arith.mulf %85, %86 : vector<1x1xf32>
      %88 = vector.shape_cast %87 : vector<1x1xf32> to vector<1x1x1xf32>
      %c0_32 = arith.constant 0 : index
      %c0_33 = arith.constant 0 : index
      %c0_34 = arith.constant 0 : index
      %89 = vector.load %arg5[%c0_32, %c0_33, %c0_34] : memref<1x1x1xf32, #tpu.memory_space<vmem>>, vector<1x1x1xf32>
      tpu.vector_store %arg5[%c0_32, %c0_33, %c0_34], %88 {strides = array<i32>} : memref<1x1x1xf32, #tpu.memory_space<vmem>>, vector<1x1x1xf32>,
    } else {
    }
    return
  }
  func.func @transform_0(%arg0: i32, %arg1: i32) -> (i32, i32) {
    %c1_i32 = arith.constant 1 : i32
    %0 = arith.muli %arg0, %c1_i32 : i32
    %1 = arith.addi %0, %arg1 : i32
    %c0_i32 = arith.constant 0 : i32
    %2 = arith.minsi %1, %c0_i32 : i32
    %c0_i32_0 = arith.constant 0 : i32
    %c0_i32_1 = arith.constant 0 : i32
    return %2, %c0_i32_0 : i32, i32
  }
  func.func @transform_1(%arg0: i32, %arg1: i32) -> (i32, i32) {
    %c1_i32 = arith.constant 1 : i32
    %0 = arith.muli %arg0, %c1_i32 : i32
    %1 = arith.addi %0, %arg1 : i32
    %c0_i32 = arith.constant 0 : i32
    %2 = arith.minsi %1, %c0_i32 : i32
    %c0_i32_0 = arith.constant 0 : i32
    %c0_i32_1 = arith.constant 0 : i32
    return %2, %c0_i32_0 : i32, i32
  }
  func.func @transform_2(%arg0: i32, %arg1: i32) -> (i32, i32) {
    %c0_i32 = arith.constant 0 : i32
    %c0_i32_0 = arith.constant 0 : i32
    %c0_i32_1 = arith.constant 0 : i32
    return %c0_i32, %c0_i32_0 : i32, i32
  }
  func.func @transform_3(%arg0: i32, %arg1: i32) -> (i32, i32, i32) {
    %c0_i32 = arith.constant 0 : i32
    %c0_i32_0 = arith.constant 0 : i32
    %c0_i32_1 = arith.constant 0 : i32
    return %arg0, %c0_i32, %c0_i32_0 : i32, i32, i32
  }
}

</mosaic_0001>

<llo_original>
// kernel: tpu_custom_call.1
$region0: #{tpu_custom_call.1}
  #allocation0 [shape = 'u32[]', space=smem, size = 0x4, offset = 0x4, fixed_abs, tag = 'smem constant byte address 0x4 - core index']
  #allocation1 [shape = 'u32[144,128]{1,0:T(1,128)}', space=vmem, size = 0x12000, scoped, tag = 'internal scratch']
  #allocation2 [shape = 'f32[8,4]{1,0:T(8,128)}', space=vmem, size = 0x1000, scoped, tag = 'scratch operand']
  %s0 = inlined_call_operand.vmem [shape: f32[8,128], index: 0, kind: input, shape index: {}]
  %s1 = inlined_call_operand.vmem [shape: f32[8,128], index: 1, kind: input, shape index: {}]
  %s2 = inlined_call_operand.vmem [shape: f32[128,4], index: 2, kind: input, shape index: {}]
  %s3 = inlined_call_operand.hbm [shape: f32[1,1,1], index: 3, kind: output, shape index: {}]
  %s4 = sld [smem:[#allocation0]]
  $region30: #{tpu_custom_call.1} parent=0
    _
  %s6 = ssub.s32 1, %s4
  %s7 = scalar_select 0, %s6, %s4
  $region1: #{tpu_custom_call.1} parent=0
    #allocation3 [shape = 'u8[512]{0}', space=vmem, size = 0x400, scoped, tag = 'output window, operand 0, single buffered']
    #allocation4 [shape = 's32[1]{0}', space=sflag, size = 0x4, scoped, tag = 'scoped memory for tpu_custom_call.1']
    %8 = vsyncpa [#allocation4], 0
    // Predicated region
    $region2: #{tpu_custom_call.1} parent=1 // pred_check
      _
    $region3: #{tpu_custom_call.1} parent=1 // pred_check_branch
      %10 = sbr.rel (0) target = $region5
    $region4: #{tpu_custom_call.1} parent=1 // pred_region
      %s11 = sadd.s32 0, 0
      %p12 = scmp.lt.s32.totalorder %s11, 0
      %s13 = scalar_select %p12, %s11, 0
      %p14 = scmp.lt.s32.totalorder %s13, 0
      %s15 = scalar_select %p14, %s13, 0
      %s16 = smul.addr %s15, 8
      %s17 = scalar_lea.vmem %s0, %s16
      %s18 = sadd.s32 0, 0
      %p19 = scmp.lt.s32.totalorder %s18, 0
      %s20 = scalar_select %p19, %s18, 0
    $region5: #{tpu_custom_call.1} parent=1 // pred_fallthru
      _
    // Predicated region
    $region6: #{tpu_custom_call.1} parent=1 // pred_check
      _
    $region7: #{tpu_custom_call.1} parent=1 // pred_check_branch
      %22 = sbr.rel (0) target = $region9
    $region8: #{tpu_custom_call.1} parent=1 // pred_region
      %s23 = sadd.s32 0, 0
      %p24 = scmp.lt.s32.totalorder %s23, 0
      %s25 = scalar_select %p24, %s23, 0
      %p26 = scmp.lt.s32.totalorder %s25, 0
      %s27 = scalar_select %p26, %s25, 0
      %s28 = smul.addr %s27, 8
      %s29 = scalar_lea.vmem %s1, %s28
      %s30 = sadd.s32 0, 0
      %p31 = scmp.lt.s32.totalorder %s30, 0
      %s32 = scalar_select %p31, %s30, 0
    $region9: #{tpu_custom_call.1} parent=1 // pred_fallthru
      _
    // Predicated region
    $region10: #{tpu_custom_call.1} parent=1 // pred_check
      _
    $region11: #{tpu_custom_call.1} parent=1 // pred_check_branch
      %34 = sbr.rel (0) target = $region13
    $region12: #{tpu_custom_call.1} parent=1 // pred_region
      _
    $region13: #{tpu_custom_call.1} parent=1 // pred_fallthru
      _
    %s35 = sadd.s32 0, 0
    %p36 = scmp.lt.s32.totalorder %s35, 0
    %s37 = scalar_select %p36, %s35, 0
    %p38 = scmp.lt.s32.totalorder %s37, 0
    %s39 = scalar_select %p38, %s37, 0
    %s40 = smul.addr %s39, 8
    %s41 = scalar_lea.vmem %s0, %s40
    %s42 = sadd.s32 0, 0
    %p43 = scmp.lt.s32.totalorder %s42, 0
    %s44 = scalar_select %p43, %s42, 0
    %p45 = scmp.lt.s32.totalorder %s44, 0
    %s46 = scalar_select %p45, %s44, 0
    %s47 = smul.addr %s46, 8
    %s48 = scalar_lea.vmem %s1, %s47
    %s49 = sadd.s32 0, 0
    %p50 = scmp.lt.s32.totalorder %s49, 0
    %s51 = scalar_select %p50, %s49, 0
    %p52 = scmp.lt.s32.totalorder %s51, 0
    %s53 = scalar_select %p52, %s51, 0
    %s54 = smul.addr %s53, 8
    %s55 = scalar_lea.vmem %s0, %s54
    %s56 = sadd.s32 0, 0
    %p57 = scmp.lt.s32.totalorder %s56, 0
    %s58 = scalar_select %p57, %s56, 0
    %s59 = sadd.s32 0, 0
    %p60 = scmp.lt.s32.totalorder %s59, 0
    %s61 = scalar_select %p60, %s59, 0
    %p62 = scmp.lt.s32.totalorder %s61, 0
    %s63 = scalar_select %p62, %s61, 0
    %s64 = smul.addr %s63, 8
    %s65 = scalar_lea.vmem %s1, %s64
    %s66 = sadd.s32 0, 0
    %p67 = scmp.lt.s32.totalorder %s66, 0
    %s68 = scalar_select %p67, %s66, 0
    %p69 = scmp.eq.s32.totalorder 0, 0
    // Predicated region
    $region14: #{tpu_custom_call.1} parent=1 // pred_check
      %p70 = pneg %p69
    $region15: #{tpu_custom_call.1} parent=1 // pred_check_branch
      %72 = sbr.rel (%p70) target = $region17
    $region16: #{tpu_custom_call.1} parent=1 // pred_region
      %vm73 = vcmask 31744
      %74 = vst.msk [vmem:[#allocation2] sm:$0xff] %vm73, 0.0
    $region17: #{tpu_custom_call.1} parent=1 // pred_fallthru
      _
    %v75 = vld [vmem:[%s55] sm:$0xff]
    %v76 = vld [vmem:[%s65] sm:$0xff]
    %v77 = vlaneseq
    %v78 = vand.u32 %v77, 127
    %79 = vrot.lane.b32.xlu0 %v76, 127
    %v80 = vpop.permute.xlu0 %79
    %81 = vrot.lane.b32.xlu0 %v76, 1
    %v82 = vpop.permute.xlu0 %81
    %v83 = vand.u32 %v78, 1
    %vm84 = vcmp.eq.s32.totalorder %v83, 0
    %v85 = vsel %vm84, 1, 0
    %vm86 = vcmp.eq.s32.totalorder %v85, 1
    %v87 = vsel %vm86, %v80, %v82
    %v88 = vmax.f32 %v76, %v87
    %89 = vrot.lane.b32.xlu0 %v88, 126
    %v90 = vpop.permute.xlu0 %89
    %91 = vrot.lane.b32.xlu0 %v88, 2
    %v92 = vpop.permute.xlu0 %91
    %v93 = vand.u32 %v78, 2
    %vm94 = vcmp.eq.s32.totalorder %v93, 0
    %v95 = vsel %vm94, 1, 0
    %vm96 = vcmp.eq.s32.totalorder %v95, 1
    %v97 = vsel %vm96, %v90, %v92
    %v98 = vmax.f32 %v88, %v97
    %99 = vrot.lane.b32.xlu0 %v98, 124
    %v100 = vpop.permute.xlu0 %99
    %101 = vrot.lane.b32.xlu0 %v98, 4
    %v102 = vpop.permute.xlu0 %101
    %v103 = vand.u32 %v78, 4
    %vm104 = vcmp.eq.s32.totalorder %v103, 0
    %v105 = vsel %vm104, 1, 0
    %vm106 = vcmp.eq.s32.totalorder %v105, 1
    %v107 = vsel %vm106, %v100, %v102
    %v108 = vmax.f32 %v98, %v107
    %109 = vrot.lane.b32.xlu0 %v108, 120
    %v110 = vpop.permute.xlu0 %109
    %111 = vrot.lane.b32.xlu0 %v108, 8
    %v112 = vpop.permute.xlu0 %111
    %v113 = vand.u32 %v78, 8
    %vm114 = vcmp.eq.s32.totalorder %v113, 0
    %v115 = vsel %vm114, 1, 0
    %vm116 = vcmp.eq.s32.totalorder %v115, 1
    %v117 = vsel %vm116, %v110, %v112
    %v118 = vmax.f32 %v108, %v117
    %119 = vrot.lane.b32.xlu0 %v118, 112
    %v120 = vpop.permute.xlu0 %119
    %121 = vrot.lane.b32.xlu0 %v118, 16
    %v122 = vpop.permute.xlu0 %121
    %v123 = vand.u32 %v78, 16
    %vm124 = vcmp.eq.s32.totalorder %v123, 0
    %v125 = vsel %vm124, 1, 0
    %vm126 = vcmp.eq.s32.totalorder %v125, 1
    %v127 = vsel %vm126, %v120, %v122
    %v128 = vmax.f32 %v118, %v127
    %v129 = vsub.f32 %v76, %v128
    %v130 = vmul.f32 %v129, 1.442695
    %v131 = vpow.pop %v130
    %v132 = vld [vmem:[%s2] sm:$0xff]
    %v133 = vld [vmem:[%s2 + $0x8] sm:$0xff]
    %v134 = vld [vmem:[%s2 + $0x10] sm:$0xff]
    %v135 = vld [vmem:[%s2 + $0x18] sm:$0xff]
    %v136 = vld [vmem:[%s2 + $0x20] sm:$0xff]
    %v137 = vld [vmem:[%s2 + $0x28] sm:$0xff]
    %v138 = vld [vmem:[%s2 + $0x30] sm:$0xff]
    %v139 = vld [vmem:[%s2 + $0x38] sm:$0xff]
    %v140 = vld [vmem:[%s2 + $0x40] sm:$0xff]
    %v141 = vld [vmem:[%s2 + $0x48] sm:$0xff]
    %v142 = vld [vmem:[%s2 + $0x50] sm:$0xff]
    %v143 = vld [vmem:[%s2 + $0x58] sm:$0xff]
    %v144 = vld [vmem:[%s2 + $0x60] sm:$0xff]
    %v145 = vld [vmem:[%s2 + $0x68] sm:$0xff]
    %v146 = vld [vmem:[%s2 + $0x70] sm:$0xff]
    %v147 = vld [vmem:[%s2 + $0x78] sm:$0xff]
    %148 = vmatprep.subr.mxu0 0.0
    %v149 = vand.u32 %v132, 4294901760
    %150 = vmatpush1.msra.mxu0 %v149
    %151 = vmatprep.subr.mxu0 0.0
    %v152 = vand.u32 %v133, 4294901760
    %153 = vmatpush1.msra.mxu0 %v152
    %154 = vmatprep.subr.mxu0 0.0
    %v155 = vand.u32 %v134, 4294901760
    %156 = vmatpush1.msra.mxu0 %v155
    %157 = vmatprep.subr.mxu0 0.0
    %v158 = vand.u32 %v135, 4294901760
    %159 = vmatpush1.msra.mxu0 %v158
    %160 = vmatprep.subr.mxu0 0.0
    %v161 = vand.u32 %v136, 4294901760
    %162 = vmatpush1.msra.mxu0 %v161
    %163 = vmatprep.subr.mxu0 0.0
    %v164 = vand.u32 %v137, 4294901760
    %165 = vmatpush1.msra.mxu0 %v164
    %166 = vmatprep.subr.mxu0 0.0
    %v167 = vand.u32 %v138, 4294901760
    %168 = vmatpush1.msra.mxu0 %v167
    %169 = vmatprep.subr.mxu0 0.0
    %v170 = vand.u32 %v139, 4294901760
    %171 = vmatpush1.msra.mxu0 %v170
    %172 = vmatprep.subr.mxu0 0.0
    %v173 = vand.u32 %v140, 4294901760
    %174 = vmatpush1.msra.mxu0 %v173
    %175 = vmatprep.subr.mxu0 0.0
    %v176 = vand.u32 %v141, 4294901760
    %177 = vmatpush1.msra.mxu0 %v176
    %178 = vmatprep.subr.mxu0 0.0
    %v179 = vand.u32 %v142, 4294901760
    %180 = vmatpush1.msra.mxu0 %v179
    %181 = vmatprep.subr.mxu0 0.0
    %v182 = vand.u32 %v143, 4294901760
    %183 = vmatpush1.msra.mxu0 %v182
    %184 = vmatprep.subr.mxu0 0.0
    %v185 = vand.u32 %v144, 4294901760
    %186 = vmatpush1.msra.mxu0 %v185
    %187 = vmatprep.subr.mxu0 0.0
    %v188 = vand.u32 %v145, 4294901760
    %189 = vmatpush1.msra.mxu0 %v188
    %190 = vmatprep.subr.mxu0 0.0
    %v191 = vand.u32 %v146, 4294901760
    %192 = vmatpush1.msra.mxu0 %v191
    %193 = vmatprep.subr.mxu0 0.0
    %v194 = vand.u32 %v147, 4294901760
    %195 = vmatpush1.msra.mxu0 %v194
    %196 = vmatprep.subr.mxu0 0.0
    %197 = vmatpush1.msra.mxu0 0.0
    %198 = vmatprep.subr.mxu0 0.0
    %199 = vmatpush1.msra.mxu0 0.0
    %200 = vmatprep.subr.mxu0 0.0
    %201 = vmatpush1.msra.mxu0 0.0
    %202 = vmatprep.subr.mxu0 0.0
    %203 = vmatpush1.msra.mxu0 0.0
    %204 = vmatprep.subr.mxu0 0.0
    %205 = vmatpush1.msra.mxu0 0.0
    %206 = vmatprep.subr.mxu0 0.0
    %207 = vmatpush1.msra.mxu0 0.0
    %208 = vmatprep.subr.mxu0 0.0
    %209 = vmatpush1.msra.mxu0 0.0
    %210 = vmatprep.subr.mxu0 0.0
    %211 = vmatpush1.msra.mxu0 0.0
    %212 = vmatprep.subr.mxu0 0.0
    %213 = vmatpush1.msra.mxu0 0.0
    %214 = vmatprep.subr.mxu0 0.0
    %215 = vmatpush1.msra.mxu0 0.0
    %216 = vmatprep.subr.mxu0 0.0
    %217 = vmatpush1.msra.mxu0 0.0
    %218 = vmatprep.subr.mxu0 0.0
    %219 = vmatpush1.msra.mxu0 0.0
    %220 = vmatprep.subr.mxu0 0.0
    %221 = vmatpush1.msra.mxu0 0.0
    %222 = vmatprep.subr.mxu0 0.0
    %223 = vmatpush1.msra.mxu0 0.0
    %224 = vmatprep.subr.mxu0 0.0
    %225 = vmatpush1.msra.mxu0 0.0
    %226 = vmatprep.subr.mxu0 0.0
    %227 = vmatpush1.msra.mxu0 0.0
    %228 = vmatprep.mubr.f32.mxu0 0.0
    %v229 = vand.u32 %v131, 4294901760
    %v230 = vsub.f32 %v131, %v229
    %v231 = vand.u32 %v230, 4294901760
    %v232 = vsub.f32 %v230, %v231
    %v233 = vand.u32 %v232, 4294901760
    %234 = vmatmul.mubr.f32.gmra.mrb[0].mxu0 %v233
    %v235 = vpop.f32.mrb[0].mxu0
    %v236 = vadd.f32 0.0, %v235
    %v237 = vpop.f32.mrb[0].mxu0
    %238 = vdwg.mxu0
    %239 = vmatprep.subr.mxu0 0.0
    %v240 = vand.u32 %v132, 4294901760
    %v241 = vsub.f32 %v132, %v240
    %v242 = vand.u32 %v241, 4294901760
    %v243 = vsub.f32 %v241, %v242
    %v244 = vand.u32 %v243, 4294901760
    %245 = vmatpush1.msra.mxu0 %v244
    %246 = vmatprep.subr.mxu0 0.0
    %v247 = vand.u32 %v133, 4294901760
    %v248 = vsub.f32 %v133, %v247
    %v249 = vand.u32 %v248, 4294901760
    %v250 = vsub.f32 %v248, %v249
    %v251 = vand.u32 %v250, 4294901760
    %252 = vmatpush1.msra.mxu0 %v251
    %253 = vmatprep.subr.mxu0 0.0
    %v254 = vand.u32 %v134, 4294901760
    %v255 = vsub.f32 %v134, %v254
    %v256 = vand.u32 %v255, 4294901760
    %v257 = vsub.f32 %v255, %v256
    %v258 = vand.u32 %v257, 4294901760
    %259 = vmatpush1.msra.mxu0 %v258
    %260 = vmatprep.subr.mxu0 0.0
    %v261 = vand.u32 %v135, 4294901760
    %v262 = vsub.f32 %v135, %v261
    %v263 = vand.u32 %v262, 4294901760
    %v264 = vsub.f32 %v262, %v263
    %v265 = vand.u32 %v264, 4294901760
    %266 = vmatpush1.msra.mxu0 %v265
    %267 = vmatprep.subr.mxu0 0.0
    %v268 = vand.u32 %v136, 4294901760
    %v269 = vsub.f32 %v136, %v268
    %v270 = vand.u32 %v269, 4294901760
    %v271 = vsub.f32 %v269, %v270
    %v272 = vand.u32 %v271, 4294901760
    %273 = vmatpush1.msra.mxu0 %v272
    %274 = vmatprep.subr.mxu0 0.0
    %v275 = vand.u32 %v137, 4294901760
    %v276 = vsub.f32 %v137, %v275
    %v277 = vand.u32 %v276, 4294901760
    %v278 = vsub.f32 %v276, %v277
    %v279 = vand.u32 %v278, 4294901760
    %280 = vmatpush1.msra.mxu0 %v279
    %281 = vmatprep.subr.mxu0 0.0
    %v282 = vand.u32 %v138, 4294901760
    %v283 = vsub.f32 %v138, %v282
    %v284 = vand.u32 %v283, 4294901760
    %v285 = vsub.f32 %v283, %v284
    %v286 = vand.u32 %v285, 4294901760
    %287 = vmatpush1.msra.mxu0 %v286
    %288 = vmatprep.subr.mxu0 0.0
    %v289 = vand.u32 %v139, 4294901760
    %v290 = vsub.f32 %v139, %v289
    %v291 = vand.u32 %v290, 4294901760
    %v292 = vsub.f32 %v290, %v291
    %v293 = vand.u32 %v292, 4294901760
    %294 = vmatpush1.msra.mxu0 %v293
    %295 = vmatprep.subr.mxu0 0.0
    %v296 = vand.u32 %v140, 4294901760
    %v297 = vsub.f32 %v140, %v296
    %v298 = vand.u32 %v297, 4294901760
    %v299 = vsub.f32 %v297, %v298
    %v300 = vand.u32 %v299, 4294901760
    %301 = vmatpush1.msra.mxu0 %v300
    %302 = vmatprep.subr.mxu0 0.0
    %v303 = vand.u32 %v141, 4294901760
    %v304 = vsub.f32 %v141, %v303
    %v305 = vand.u32 %v304, 4294901760
    %v306 = vsub.f32 %v304, %v305
    %v307 = vand.u32 %v306, 4294901760
    %308 = vmatpush1.msra.mxu0 %v307
    %309 = vmatprep.subr.mxu0 0.0
    %v310 = vand.u32 %v142, 4294901760
    %v311 = vsub.f32 %v142, %v310
    %v312 = vand.u32 %v311, 4294901760
    %v313 = vsub.f32 %v311, %v312
    %v314 = vand.u32 %v313, 4294901760
    %315 = vmatpush1.msra.mxu0 %v314
    %316 = vmatprep.subr.mxu0 0.0
    %v317 = vand.u32 %v143, 4294901760
    %v318 = vsub.f32 %v143, %v317
    %v319 = vand.u32 %v318, 4294901760
    %v320 = vsub.f32 %v318, %v319
    %v321 = vand.u32 %v320, 4294901760
    %322 = vmatpush1.msra.mxu0 %v321
    %323 = vmatprep.subr.mxu0 0.0
    %v324 = vand.u32 %v144, 4294901760
    %v325 = vsub.f32 %v144, %v324
    %v326 = vand.u32 %v325, 4294901760
    %v327 = vsub.f32 %v325, %v326
    %v328 = vand.u32 %v327, 4294901760
    %329 = vmatpush1.msra.mxu0 %v328
    %330 = vmatprep.subr.mxu0 0.0
    %v331 = vand.u32 %v145, 4294901760
    %v332 = vsub.f32 %v145, %v331
    %v333 = vand.u32 %v332, 4294901760
    %v334 = vsub.f32 %v332, %v333
    %v335 = vand.u32 %v334, 4294901760
    %336 = vmatpush1.msra.mxu0 %v335
    %337 = vmatprep.subr.mxu0 0.0
    %v338 = vand.u32 %v146, 4294901760
    %v339 = vsub.f32 %v146, %v338
    %v340 = vand.u32 %v339, 4294901760
    %v341 = vsub.f32 %v339, %v340
    %v342 = vand.u32 %v341, 4294901760
    %343 = vmatpush1.msra.mxu0 %v342
    %344 = vmatprep.subr.mxu0 0.0
    %v345 = vand.u32 %v147, 4294901760
    %v346 = vsub.f32 %v147, %v345
    %v347 = vand.u32 %v346, 4294901760
    %v348 = vsub.f32 %v346, %v347
    %v349 = vand.u32 %v348, 4294901760
    %350 = vmatpush1.msra.mxu0 %v349
    %351 = vmatprep.subr.mxu0 0.0
    %352 = vmatpush1.msra.mxu0 0.0
    %353 = vmatprep.subr.mxu0 0.0
    %354 = vmatpush1.msra.mxu0 0.0
    %355 = vmatprep.subr.mxu0 0.0
    %356 = vmatpush1.msra.mxu0 0.0
    %357 = vmatprep.subr.mxu0 0.0
    %358 = vmatpush1.msra.mxu0 0.0
    %359 = vmatprep.subr.mxu0 0.0
    %360 = vmatpush1.msra.mxu0 0.0
    %361 = vmatprep.subr.mxu0 0.0
    %362 = vmatpush1.msra.mxu0 0.0
    %363 = vmatprep.subr.mxu0 0.0
    %364 = vmatpush1.msra.mxu0 0.0
    %365 = vmatprep.subr.mxu0 0.0
    %366 = vmatpush1.msra.mxu0 0.0
    %367 = vmatprep.subr.mxu0 0.0
    %368 = vmatpush1.msra.mxu0 0.0
    %369 = vmatprep.subr.mxu0 0.0
    %370 = vmatpush1.msra.mxu0 0.0
    %371 = vmatprep.subr.mxu0 0.0
    %372 = vmatpush1.msra.mxu0 0.0
    %373 = vmatprep.subr.mxu0 0.0
    %374 = vmatpush1.msra.mxu0 0.0
    %375 = vmatprep.subr.mxu0 0.0
    %376 = vmatpush1.msra.mxu0 0.0
    %377 = vmatprep.subr.mxu0 0.0
    %378 = vmatpush1.msra.mxu0 0.0
    %379 = vmatprep.subr.mxu0 0.0
    %380 = vmatpush1.msra.mxu0 0.0
    %381 = vmatprep.subr.mxu0 0.0
    %382 = vmatpush1.msra.mxu0 0.0
    %383 = vmatprep.mubr.f32.mxu0 0.0
    %v384 = vand.u32 %v131, 4294901760
    %385 = vmatmul.mubr.f32.gmra.mrb[0].mxu0 %v384
    %v386 = vpop.f32.mrb[0].mxu0
    %v387 = vadd.f32 %v236, %v386
    %v388 = vpop.f32.mrb[0].mxu0
    %389 = vdwg.mxu0
    %390 = vmatprep.subr.mxu0 0.0
    %v391 = vand.u32 %v132, 4294901760
    %v392 = vsub.f32 %v132, %v391
    %393 = vmatpush1.msra.mxu0 %v392
    %394 = vmatprep.subr.mxu0 0.0
    %v395 = vand.u32 %v133, 4294901760
    %v396 = vsub.f32 %v133, %v395
    %397 = vmatpush1.msra.mxu0 %v396
    %398 = vmatprep.subr.mxu0 0.0
    %v399 = vand.u32 %v134, 4294901760
    %v400 = vsub.f32 %v134, %v399
    %401 = vmatpush1.msra.mxu0 %v400
    %402 = vmatprep.subr.mxu0 0.0
    %v403 = vand.u32 %v135, 4294901760
    %v404 = vsub.f32 %v135, %v403
    %405 = vmatpush1.msra.mxu0 %v404
    %406 = vmatprep.subr.mxu0 0.0
    %v407 = vand.u32 %v136, 4294901760
    %v408 = vsub.f32 %v136, %v407
    %409 = vmatpush1.msra.mxu0 %v408
    %410 = vmatprep.subr.mxu0 0.0
    %v411 = vand.u32 %v137, 4294901760
    %v412 = vsub.f32 %v137, %v411
    %413 = vmatpush1.msra.mxu0 %v412
    %414 = vmatprep.subr.mxu0 0.0
    %v415 = vand.u32 %v138, 4294901760
    %v416 = vsub.f32 %v138, %v415
    %417 = vmatpush1.msra.mxu0 %v416
    %418 = vmatprep.subr.mxu0 0.0
    %v419 = vand.u32 %v139, 4294901760
    %v420 = vsub.f32 %v139, %v419
    %421 = vmatpush1.msra.mxu0 %v420
    %422 = vmatprep.subr.mxu0 0.0
    %v423 = vand.u32 %v140, 4294901760
    %v424 = vsub.f32 %v140, %v423
    %425 = vmatpush1.msra.mxu0 %v424
    %426 = vmatprep.subr.mxu0 0.0
    %v427 = vand.u32 %v141, 4294901760
    %v428 = vsub.f32 %v141, %v427
    %429 = vmatpush1.msra.mxu0 %v428
    %430 = vmatprep.subr.mxu0 0.0
    %v431 = vand.u32 %v142, 4294901760
    %v432 = vsub.f32 %v142, %v431
    %433 = vmatpush1.msra.mxu0 %v432
    %434 = vmatprep.subr.mxu0 0.0
    %v435 = vand.u32 %v143, 4294901760
    %v436 = vsub.f32 %v143, %v435
    %437 = vmatpush1.msra.mxu0 %v436
    %438 = vmatprep.subr.mxu0 0.0
    %v439 = vand.u32 %v144, 4294901760
    %v440 = vsub.f32 %v144, %v439
    %441 = vmatpush1.msra.mxu0 %v440
    %442 = vmatprep.subr.mxu0 0.0
    %v443 = vand.u32 %v145, 4294901760
    %v444 = vsub.f32 %v145, %v443
    %445 = vmatpush1.msra.mxu0 %v444
    %446 = vmatprep.subr.mxu0 0.0
    %v447 = vand.u32 %v146, 4294901760
    %v448 = vsub.f32 %v146, %v447
    %449 = vmatpush1.msra.mxu0 %v448
    %450 = vmatprep.subr.mxu0 0.0
    %v451 = vand.u32 %v147, 4294901760
    %v452 = vsub.f32 %v147, %v451
    %453 = vmatpush1.msra.mxu0 %v452
    %454 = vmatprep.subr.mxu0 0.0
    %455 = vmatpush1.msra.mxu0 0.0
    %456 = vmatprep.subr.mxu0 0.0
    %457 = vmatpush1.msra.mxu0 0.0
    %458 = vmatprep.subr.mxu0 0.0
    %459 = vmatpush1.msra.mxu0 0.0
    %460 = vmatprep.subr.mxu0 0.0
    %461 = vmatpush1.msra.mxu0 0.0
    %462 = vmatprep.subr.mxu0 0.0
    %463 = vmatpush1.msra.mxu0 0.0
    %464 = vmatprep.subr.mxu0 0.0
    %465 = vmatpush1.msra.mxu0 0.0
    %466 = vmatprep.subr.mxu0 0.0
    %467 = vmatpush1.msra.mxu0 0.0
    %468 = vmatprep.subr.mxu0 0.0
    %469 = vmatpush1.msra.mxu0 0.0
    %470 = vmatprep.subr.mxu0 0.0
    %471 = vmatpush1.msra.mxu0 0.0
    %472 = vmatprep.subr.mxu0 0.0
    %473 = vmatpush1.msra.mxu0 0.0
    %474 = vmatprep.subr.mxu0 0.0
    %475 = vmatpush1.msra.mxu0 0.0
    %476 = vmatprep.subr.mxu0 0.0
    %477 = vmatpush1.msra.mxu0 0.0
    %478 = vmatprep.subr.mxu0 0.0
    %479 = vmatpush1.msra.mxu0 0.0
    %480 = vmatprep.subr.mxu0 0.0
    %481 = vmatpush1.msra.mxu0 0.0
    %482 = vmatprep.subr.mxu0 0.0
    %483 = vmatpush1.msra.mxu0 0.0
    %484 = vmatprep.subr.mxu0 0.0
    %485 = vmatpush1.msra.mxu0 0.0
    %486 = vmatprep.mubr.f32.mxu0 0.0
    %v487 = vand.u32 %v131, 4294901760
    %v488 = vsub.f32 %v131, %v487
    %489 = vmatmul.mubr.f32.gmra.mrb[0].mxu0 %v488
    %v490 = vpop.f32.mrb[0].mxu0
    %v491 = vadd.f32 %v387, %v490
    %v492 = vpop.f32.mrb[0].mxu0
    %493 = vdwg.mxu0
    %494 = vmatprep.subr.mxu0 0.0
    %v495 = vand.u32 %v132, 4294901760
    %496 = vmatpush1.msra.mxu0 %v495
    %497 = vmatprep.subr.mxu0 0.0
    %v498 = vand.u32 %v133, 4294901760
    %499 = vmatpush1.msra.mxu0 %v498
    %500 = vmatprep.subr.mxu0 0.0
    %v501 = vand.u32 %v134, 4294901760
    %502 = vmatpush1.msra.mxu0 %v501
    %503 = vmatprep.subr.mxu0 0.0
    %v504 = vand.u32 %v135, 4294901760
    %505 = vmatpush1.msra.mxu0 %v504
    %506 = vmatprep.subr.mxu0 0.0
    %v507 = vand.u32 %v136, 4294901760
    %508 = vmatpush1.msra.mxu0 %v507
    %509 = vmatprep.subr.mxu0 0.0
    %v510 = vand.u32 %v137, 4294901760
    %511 = vmatpush1.msra.mxu0 %v510
    %512 = vmatprep.subr.mxu0 0.0
    %v513 = vand.u32 %v138, 4294901760
    %514 = vmatpush1.msra.mxu0 %v513
    %515 = vmatprep.subr.mxu0 0.0
    %v516 = vand.u32 %v139, 4294901760
    %517 = vmatpush1.msra.mxu0 %v516
    %518 = vmatprep.subr.mxu0 0.0
    %v519 = vand.u32 %v140, 4294901760
    %520 = vmatpush1.msra.mxu0 %v519
    %521 = vmatprep.subr.mxu0 0.0
    %v522 = vand.u32 %v141, 4294901760
    %523 = vmatpush1.msra.mxu0 %v522
    %524 = vmatprep.subr.mxu0 0.0
    %v525 = vand.u32 %v142, 4294901760
    %526 = vmatpush1.msra.mxu0 %v525
    %527 = vmatprep.subr.mxu0 0.0
    %v528 = vand.u32 %v143, 4294901760
    %529 = vmatpush1.msra.mxu0 %v528
    %530 = vmatprep.subr.mxu0 0.0
    %v531 = vand.u32 %v144, 4294901760
    %532 = vmatpush1.msra.mxu0 %v531
    %533 = vmatprep.subr.mxu0 0.0
    %v534 = vand.u32 %v145, 4294901760
    %535 = vmatpush1.msra.mxu0 %v534
    %536 = vmatprep.subr.mxu0 0.0
    %v537 = vand.u32 %v146, 4294901760
    %538 = vmatpush1.msra.mxu0 %v537
    %539 = vmatprep.subr.mxu0 0.0
    %v540 = vand.u32 %v147, 4294901760
    %541 = vmatpush1.msra.mxu0 %v540
    %542 = vmatprep.subr.mxu0 0.0
    %543 = vmatpush1.msra.mxu0 0.0
    %544 = vmatprep.subr.mxu0 0.0
    %545 = vmatpush1.msra.mxu0 0.0
    %546 = vmatprep.subr.mxu0 0.0
    %547 = vmatpush1.msra.mxu0 0.0
    %548 = vmatprep.subr.mxu0 0.0
    %549 = vmatpush1.msra.mxu0 0.0
    %550 = vmatprep.subr.mxu0 0.0
    %551 = vmatpush1.msra.mxu0 0.0
    %552 = vmatprep.subr.mxu0 0.0
    %553 = vmatpush1.msra.mxu0 0.0
    %554 = vmatprep.subr.mxu0 0.0
    %555 = vmatpush1.msra.mxu0 0.0
    %556 = vmatprep.subr.mxu0 0.0
    %557 = vmatpush1.msra.mxu0 0.0
    %558 = vmatprep.subr.mxu0 0.0
    %559 = vmatpush1.msra.mxu0 0.0
    %560 = vmatprep.subr.mxu0 0.0
    %561 = vmatpush1.msra.mxu0 0.0
    %562 = vmatprep.subr.mxu0 0.0
    %563 = vmatpush1.msra.mxu0 0.0
    %564 = vmatprep.subr.mxu0 0.0
    %565 = vmatpush1.msra.mxu0 0.0
    %566 = vmatprep.subr.mxu0 0.0
    %567 = vmatpush1.msra.mxu0 0.0
    %568 = vmatprep.subr.mxu0 0.0
    %569 = vmatpush1.msra.mxu0 0.0
    %570 = vmatprep.subr.mxu0 0.0
    %571 = vmatpush1.msra.mxu0 0.0
    %572 = vmatprep.subr.mxu0 0.0
    %573 = vmatpush1.msra.mxu0 0.0
    %574 = vmatprep.mubr.f32.mxu0 0.0
    %v575 = vand.u32 %v131, 4294901760
    %v576 = vsub.f32 %v131, %v575
    %v577 = vand.u32 %v576, 4294901760
    %578 = vmatmul.mubr.f32.gmra.mrb[0].mxu0 %v577
    %v579 = vpop.f32.mrb[0].mxu0
    %v580 = vadd.f32 %v491, %v579
    %v581 = vpop.f32.mrb[0].mxu0
    %582 = vdwg.mxu0
    %583 = vmatprep.subr.mxu0 0.0
    %v584 = vand.u32 %v132, 4294901760
    %v585 = vsub.f32 %v132, %v584
    %v586 = vand.u32 %v585, 4294901760
    %587 = vmatpush1.msra.mxu0 %v586
    %588 = vmatprep.subr.mxu0 0.0
    %v589 = vand.u32 %v133, 4294901760
    %v590 = vsub.f32 %v133, %v589
    %v591 = vand.u32 %v590, 4294901760
    %592 = vmatpush1.msra.mxu0 %v591
    %593 = vmatprep.subr.mxu0 0.0
    %v594 = vand.u32 %v134, 4294901760
    %v595 = vsub.f32 %v134, %v594
    %v596 = vand.u32 %v595, 4294901760
    %597 = vmatpush1.msra.mxu0 %v596
    %598 = vmatprep.subr.mxu0 0.0
    %v599 = vand.u32 %v135, 4294901760
    %v600 = vsub.f32 %v135, %v599
    %v601 = vand.u32 %v600, 4294901760
    %602 = vmatpush1.msra.mxu0 %v601
    %603 = vmatprep.subr.mxu0 0.0
    %v604 = vand.u32 %v136, 4294901760
    %v605 = vsub.f32 %v136, %v604
    %v606 = vand.u32 %v605, 4294901760
    %607 = vmatpush1.msra.mxu0 %v606
    %608 = vmatprep.subr.mxu0 0.0
    %v609 = vand.u32 %v137, 4294901760
    %v610 = vsub.f32 %v137, %v609
    %v611 = vand.u32 %v610, 4294901760
    %612 = vmatpush1.msra.mxu0 %v611
    %613 = vmatprep.subr.mxu0 0.0
    %v614 = vand.u32 %v138, 4294901760
    %v615 = vsub.f32 %v138, %v614
    %v616 = vand.u32 %v615, 4294901760
    %617 = vmatpush1.msra.mxu0 %v616
    %618 = vmatprep.subr.mxu0 0.0
    %v619 = vand.u32 %v139, 4294901760
    %v620 = vsub.f32 %v139, %v619
    %v621 = vand.u32 %v620, 4294901760
    %622 = vmatpush1.msra.mxu0 %v621
    %623 = vmatprep.subr.mxu0 0.0
    %v624 = vand.u32 %v140, 4294901760
    %v625 = vsub.f32 %v140, %v624
    %v626 = vand.u32 %v625, 4294901760
    %627 = vmatpush1.msra.mxu0 %v626
    %628 = vmatprep.subr.mxu0 0.0
    %v629 = vand.u32 %v141, 4294901760
    %v630 = vsub.f32 %v141, %v629
    %v631 = vand.u32 %v630, 4294901760
    %632 = vmatpush1.msra.mxu0 %v631
    %633 = vmatprep.subr.mxu0 0.0
    %v634 = vand.u32 %v142, 4294901760
    %v635 = vsub.f32 %v142, %v634
    %v636 = vand.u32 %v635, 4294901760
    %637 = vmatpush1.msra.mxu0 %v636
    %638 = vmatprep.subr.mxu0 0.0
    %v639 = vand.u32 %v143, 4294901760
    %v640 = vsub.f32 %v143, %v639
    %v641 = vand.u32 %v640, 4294901760
    %642 = vmatpush1.msra.mxu0 %v641
    %643 = vmatprep.subr.mxu0 0.0
    %v644 = vand.u32 %v144, 4294901760
    %v645 = vsub.f32 %v144, %v644
    %v646 = vand.u32 %v645, 4294901760
    %647 = vmatpush1.msra.mxu0 %v646
    %648 = vmatprep.subr.mxu0 0.0
    %v649 = vand.u32 %v145, 4294901760
    %v650 = vsub.f32 %v145, %v649
    %v651 = vand.u32 %v650, 4294901760
    %652 = vmatpush1.msra.mxu0 %v651
    %653 = vmatprep.subr.mxu0 0.0
    %v654 = vand.u32 %v146, 4294901760
    %v655 = vsub.f32 %v146, %v654
    %v656 = vand.u32 %v655, 4294901760
    %657 = vmatpush1.msra.mxu0 %v656
    %658 = vmatprep.subr.mxu0 0.0
    %v659 = vand.u32 %v147, 4294901760
    %v660 = vsub.f32 %v147, %v659
    %v661 = vand.u32 %v660, 4294901760
    %662 = vmatpush1.msra.mxu0 %v661
    %663 = vmatprep.subr.mxu0 0.0
    %664 = vmatpush1.msra.mxu0 0.0
    %665 = vmatprep.subr.mxu0 0.0
    %666 = vmatpush1.msra.mxu0 0.0
    %667 = vmatprep.subr.mxu0 0.0
    %668 = vmatpush1.msra.mxu0 0.0
    %669 = vmatprep.subr.mxu0 0.0
    %670 = vmatpush1.msra.mxu0 0.0
    %671 = vmatprep.subr.mxu0 0.0
    %672 = vmatpush1.msra.mxu0 0.0
    %673 = vmatprep.subr.mxu0 0.0
    %674 = vmatpush1.msra.mxu0 0.0
    %675 = vmatprep.subr.mxu0 0.0
    %676 = vmatpush1.msra.mxu0 0.0
    %677 = vmatprep.subr.mxu0 0.0
    %678 = vmatpush1.msra.mxu0 0.0
    %679 = vmatprep.subr.mxu0 0.0
    %680 = vmatpush1.msra.mxu0 0.0
    %681 = vmatprep.subr.mxu0 0.0
    %682 = vmatpush1.msra.mxu0 0.0
    %683 = vmatprep.subr.mxu0 0.0
    %684 = vmatpush1.msra.mxu0 0.0
    %685 = vmatprep.subr.mxu0 0.0
    %686 = vmatpush1.msra.mxu0 0.0
    %687 = vmatprep.subr.mxu0 0.0
    %688 = vmatpush1.msra.mxu0 0.0
    %689 = vmatprep.subr.mxu0 0.0
    %690 = vmatpush1.msra.mxu0 0.0
    %691 = vmatprep.subr.mxu0 0.0
    %692 = vmatpush1.msra.mxu0 0.0
    %693 = vmatprep.subr.mxu0 0.0
    %694 = vmatpush1.msra.mxu0 0.0
    %695 = vmatprep.mubr.f32.mxu0 0.0
    %v696 = vand.u32 %v131, 4294901760
    %697 = vmatmul.mubr.f32.gmra.mrb[0].mxu0 %v696
    %v698 = vpop.f32.mrb[0].mxu0
    %v699 = vadd.f32 %v580, %v698
    %v700 = vpop.f32.mrb[0].mxu0
    %701 = vdwg.mxu0
    %702 = vmatprep.subr.mxu0 0.0
    %v703 = vand.u32 %v132, 4294901760
    %704 = vmatpush1.msra.mxu0 %v703
    %705 = vmatprep.subr.mxu0 0.0
    %v706 = vand.u32 %v133, 4294901760
    %707 = vmatpush1.msra.mxu0 %v706
    %708 = vmatprep.subr.mxu0 0.0
    %v709 = vand.u32 %v134, 4294901760
    %710 = vmatpush1.msra.mxu0 %v709
    %711 = vmatprep.subr.mxu0 0.0
    %v712 = vand.u32 %v135, 4294901760
    %713 = vmatpush1.msra.mxu0 %v712
    %714 = vmatprep.subr.mxu0 0.0
    %v715 = vand.u32 %v136, 4294901760
    %716 = vmatpush1.msra.mxu0 %v715
    %717 = vmatprep.subr.mxu0 0.0
    %v718 = vand.u32 %v137, 4294901760
    %719 = vmatpush1.msra.mxu0 %v718
    %720 = vmatprep.subr.mxu0 0.0
    %v721 = vand.u32 %v138, 4294901760
    %722 = vmatpush1.msra.mxu0 %v721
    %723 = vmatprep.subr.mxu0 0.0
    %v724 = vand.u32 %v139, 4294901760
    %725 = vmatpush1.msra.mxu0 %v724
    %726 = vmatprep.subr.mxu0 0.0
    %v727 = vand.u32 %v140, 4294901760
    %728 = vmatpush1.msra.mxu0 %v727
    %729 = vmatprep.subr.mxu0 0.0
    %v730 = vand.u32 %v141, 4294901760
    %731 = vmatpush1.msra.mxu0 %v730
    %732 = vmatprep.subr.mxu0 0.0
    %v733 = vand.u32 %v142, 4294901760
    %734 = vmatpush1.msra.mxu0 %v733
    %735 = vmatprep.subr.mxu0 0.0
    %v736 = vand.u32 %v143, 4294901760
    %737 = vmatpush1.msra.mxu0 %v736
    %738 = vmatprep.subr.mxu0 0.0
    %v739 = vand.u32 %v144, 4294901760
    %740 = vmatpush1.msra.mxu0 %v739
    %741 = vmatprep.subr.mxu0 0.0
    %v742 = vand.u32 %v145, 4294901760
    %743 = vmatpush1.msra.mxu0 %v742
    %744 = vmatprep.subr.mxu0 0.0
    %v745 = vand.u32 %v146, 4294901760
    %746 = vmatpush1.msra.mxu0 %v745
    %747 = vmatprep.subr.mxu0 0.0
    %v748 = vand.u32 %v147, 4294901760
    %749 = vmatpush1.msra.mxu0 %v748
    %750 = vmatprep.subr.mxu0 0.0
    %751 = vmatpush1.msra.mxu0 0.0
    %752 = vmatprep.subr.mxu0 0.0
    %753 = vmatpush1.msra.mxu0 0.0
    %754 = vmatprep.subr.mxu0 0.0
    %755 = vmatpush1.msra.mxu0 0.0
    %756 = vmatprep.subr.mxu0 0.0
    %757 = vmatpush1.msra.mxu0 0.0
    %758 = vmatprep.subr.mxu0 0.0
    %759 = vmatpush1.msra.mxu0 0.0
    %760 = vmatprep.subr.mxu0 0.0
    %761 = vmatpush1.msra.mxu0 0.0
    %762 = vmatprep.subr.mxu0 0.0
    %763 = vmatpush1.msra.mxu0 0.0
    %764 = vmatprep.subr.mxu0 0.0
    %765 = vmatpush1.msra.mxu0 0.0
    %766 = vmatprep.subr.mxu0 0.0
    %767 = vmatpush1.msra.mxu0 0.0
    %768 = vmatprep.subr.mxu0 0.0
    %769 = vmatpush1.msra.mxu0 0.0
    %770 = vmatprep.subr.mxu0 0.0
    %771 = vmatpush1.msra.mxu0 0.0
    %772 = vmatprep.subr.mxu0 0.0
    %773 = vmatpush1.msra.mxu0 0.0
    %774 = vmatprep.subr.mxu0 0.0
    %775 = vmatpush1.msra.mxu0 0.0
    %776 = vmatprep.subr.mxu0 0.0
    %777 = vmatpush1.msra.mxu0 0.0
    %778 = vmatprep.subr.mxu0 0.0
    %779 = vmatpush1.msra.mxu0 0.0
    %780 = vmatprep.subr.mxu0 0.0
    %781 = vmatpush1.msra.mxu0 0.0
    %782 = vmatprep.mubr.f32.mxu0 0.0
    %v783 = vand.u32 %v131, 4294901760
    %784 = vmatmul.mubr.f32.gmra.mrb[0].mxu0 %v783
    %v785 = vpop.f32.mrb[0].mxu0
    %v786 = vadd.f32 %v699, %v785
    %v787 = vpop.f32.mrb[0].mxu0
    %788 = vdwg.mxu0
    %v789 = vmul.f32 %v75, %v131
    %790 = vmatprep.subr.mxu0 0.0
    %v791 = vand.u32 %v132, 4294901760
    %792 = vmatpush1.msra.mxu0 %v791
    %793 = vmatprep.subr.mxu0 0.0
    %v794 = vand.u32 %v133, 4294901760
    %795 = vmatpush1.msra.mxu0 %v794
    %796 = vmatprep.subr.mxu0 0.0
    %v797 = vand.u32 %v134, 4294901760
    %798 = vmatpush1.msra.mxu0 %v797
    %799 = vmatprep.subr.mxu0 0.0
    %v800 = vand.u32 %v135, 4294901760
    %801 = vmatpush1.msra.mxu0 %v800
    %802 = vmatprep.subr.mxu0 0.0
    %v803 = vand.u32 %v136, 4294901760
    %804 = vmatpush1.msra.mxu0 %v803
    %805 = vmatprep.subr.mxu0 0.0
    %v806 = vand.u32 %v137, 4294901760
    %807 = vmatpush1.msra.mxu0 %v806
    %808 = vmatprep.subr.mxu0 0.0
    %v809 = vand.u32 %v138, 4294901760
    %810 = vmatpush1.msra.mxu0 %v809
    %811 = vmatprep.subr.mxu0 0.0
    %v812 = vand.u32 %v139, 4294901760
    %813 = vmatpush1.msra.mxu0 %v812
    %814 = vmatprep.subr.mxu0 0.0
    %v815 = vand.u32 %v140, 4294901760
    %816 = vmatpush1.msra.mxu0 %v815
    %817 = vmatprep.subr.mxu0 0.0
    %v818 = vand.u32 %v141, 4294901760
    %819 = vmatpush1.msra.mxu0 %v818
    %820 = vmatprep.subr.mxu0 0.0
    %v821 = vand.u32 %v142, 4294901760
    %822 = vmatpush1.msra.mxu0 %v821
    %823 = vmatprep.subr.mxu0 0.0
    %v824 = vand.u32 %v143, 4294901760
    %825 = vmatpush1.msra.mxu0 %v824
    %826 = vmatprep.subr.mxu0 0.0
    %v827 = vand.u32 %v144, 4294901760
    %828 = vmatpush1.msra.mxu0 %v827
    %829 = vmatprep.subr.mxu0 0.0
    %v830 = vand.u32 %v145, 4294901760
    %831 = vmatpush1.msra.mxu0 %v830
    %832 = vmatprep.subr.mxu0 0.0
    %v833 = vand.u32 %v146, 4294901760
    %834 = vmatpush1.msra.mxu0 %v833
    %835 = vmatprep.subr.mxu0 0.0
    %v836 = vand.u32 %v147, 4294901760
    %837 = vmatpush1.msra.mxu0 %v836
    %838 = vmatprep.subr.mxu0 0.0
    %839 = vmatpush1.msra.mxu0 0.0
    %840 = vmatprep.subr.mxu0 0.0
    %841 = vmatpush1.msra.mxu0 0.0
    %842 = vmatprep.subr.mxu0 0.0
    %843 = vmatpush1.msra.mxu0 0.0
    %844 = vmatprep.subr.mxu0 0.0
    %845 = vmatpush1.msra.mxu0 0.0
    %846 = vmatprep.subr.mxu0 0.0
    %847 = vmatpush1.msra.mxu0 0.0
    %848 = vmatprep.subr.mxu0 0.0
    %849 = vmatpush1.msra.mxu0 0.0
    %850 = vmatprep.subr.mxu0 0.0
    %851 = vmatpush1.msra.mxu0 0.0
    %852 = vmatprep.subr.mxu0 0.0
    %853 = vmatpush1.msra.mxu0 0.0
    %854 = vmatprep.subr.mxu0 0.0
    %855 = vmatpush1.msra.mxu0 0.0
    %856 = vmatprep.subr.mxu0 0.0
    %857 = vmatpush1.msra.mxu0 0.0
    %858 = vmatprep.subr.mxu0 0.0
    %859 = vmatpush1.msra.mxu0 0.0
    %860 = vmatprep.subr.mxu0 0.0
    %861 = vmatpush1.msra.mxu0 0.0
    %862 = vmatprep.subr.mxu0 0.0
    %863 = vmatpush1.msra.mxu0 0.0
    %864 = vmatprep.subr.mxu0 0.0
    %865 = vmatpush1.msra.mxu0 0.0
    %866 = vmatprep.subr.mxu0 0.0
    %867 = vmatpush1.msra.mxu0 0.0
    %868 = vmatprep.subr.mxu0 0.0
    %869 = vmatpush1.msra.mxu0 0.0
    %870 = vmatprep.mubr.f32.mxu0 0.0
    %v871 = vand.u32 %v789, 4294901760
    %v872 = vsub.f32 %v789, %v871
    %v873 = vand.u32 %v872, 4294901760
    %v874 = vsub.f32 %v872, %v873
    %v875 = vand.u32 %v874, 4294901760
    %876 = vmatmul.mubr.f32.gmra.mrb[0].mxu0 %v875
    %v877 = vpop.f32.mrb[0].mxu0
    %v878 = vadd.f32 0.0, %v877
    %v879 = vpop.f32.mrb[0].mxu0
    %880 = vdwg.mxu0
    %881 = vmatprep.subr.mxu0 0.0
    %v882 = vand.u32 %v132, 4294901760
    %v883 = vsub.f32 %v132, %v882
    %v884 = vand.u32 %v883, 4294901760
    %v885 = vsub.f32 %v883, %v884
    %v886 = vand.u32 %v885, 4294901760
    %887 = vmatpush1.msra.mxu0 %v886
    %888 = vmatprep.subr.mxu0 0.0
    %v889 = vand.u32 %v133, 4294901760
    %v890 = vsub.f32 %v133, %v889
    %v891 = vand.u32 %v890, 4294901760
    %v892 = vsub.f32 %v890, %v891
    %v893 = vand.u32 %v892, 4294901760
    %894 = vmatpush1.msra.mxu0 %v893
    %895 = vmatprep.subr.mxu0 0.0
    %v896 = vand.u32 %v134, 4294901760
    %v897 = vsub.f32 %v134, %v896
    %v898 = vand.u32 %v897, 4294901760
    %v899 = vsub.f32 %v897, %v898
    %v900 = vand.u32 %v899, 4294901760
    %901 = vmatpush1.msra.mxu0 %v900
    %902 = vmatprep.subr.mxu0 0.0
    %v903 = vand.u32 %v135, 4294901760
    %v904 = vsub.f32 %v135, %v903
    %v905 = vand.u32 %v904, 4294901760
    %v906 = vsub.f32 %v904, %v905
    %v907 = vand.u32 %v906, 4294901760
    %908 = vmatpush1.msra.mxu0 %v907
    %909 = vmatprep.subr.mxu0 0.0
    %v910 = vand.u32 %v136, 4294901760
    %v911 = vsub.f32 %v136, %v910
    %v912 = vand.u32 %v911, 4294901760
    %v913 = vsub.f32 %v911, %v912
    %v914 = vand.u32 %v913, 4294901760
    %915 = vmatpush1.msra.mxu0 %v914
    %916 = vmatprep.subr.mxu0 0.0
    %v917 = vand.u32 %v137, 4294901760
    %v918 = vsub.f32 %v137, %v917
    %v919 = vand.u32 %v918, 4294901760
    %v920 = vsub.f32 %v918, %v919
    %v921 = vand.u32 %v920, 4294901760
    %922 = vmatpush1.msra.mxu0 %v921
    %923 = vmatprep.subr.mxu0 0.0
    %v924 = vand.u32 %v138, 4294901760
    %v925 = vsub.f32 %v138, %v924
    %v926 = vand.u32 %v925, 4294901760
    %v927 = vsub.f32 %v925, %v926
    %v928 = vand.u32 %v927, 4294901760
    %929 = vmatpush1.msra.mxu0 %v928
    %930 = vmatprep.subr.mxu0 0.0
    %v931 = vand.u32 %v139, 4294901760
    %v932 = vsub.f32 %v139, %v931
    %v933 = vand.u32 %v932, 4294901760
    %v934 = vsub.f32 %v932, %v933
    %v935 = vand.u32 %v934, 4294901760
    %936 = vmatpush1.msra.mxu0 %v935
    %937 = vmatprep.subr.mxu0 0.0
    %v938 = vand.u32 %v140, 4294901760
    %v939 = vsub.f32 %v140, %v938
    %v940 = vand.u32 %v939, 4294901760
    %v941 = vsub.f32 %v939, %v940
    %v942 = vand.u32 %v941, 4294901760
    %943 = vmatpush1.msra.mxu0 %v942
    %944 = vmatprep.subr.mxu0 0.0
    %v945 = vand.u32 %v141, 4294901760
    %v946 = vsub.f32 %v141, %v945
    %v947 = vand.u32 %v946, 4294901760
    %v948 = vsub.f32 %v946, %v947
    %v949 = vand.u32 %v948, 4294901760
    %950 = vmatpush1.msra.mxu0 %v949
    %951 = vmatprep.subr.mxu0 0.0
    %v952 = vand.u32 %v142, 4294901760
    %v953 = vsub.f32 %v142, %v952
    %v954 = vand.u32 %v953, 4294901760
    %v955 = vsub.f32 %v953, %v954
    %v956 = vand.u32 %v955, 4294901760
    %957 = vmatpush1.msra.mxu0 %v956
    %958 = vmatprep.subr.mxu0 0.0
    %v959 = vand.u32 %v143, 4294901760
    %v960 = vsub.f32 %v143, %v959
    %v961 = vand.u32 %v960, 4294901760
    %v962 = vsub.f32 %v960, %v961
    %v963 = vand.u32 %v962, 4294901760
    %964 = vmatpush1.msra.mxu0 %v963
    %965 = vmatprep.subr.mxu0 0.0
    %v966 = vand.u32 %v144, 4294901760
    %v967 = vsub.f32 %v144, %v966
    %v968 = vand.u32 %v967, 4294901760
    %v969 = vsub.f32 %v967, %v968
    %v970 = vand.u32 %v969, 4294901760
    %971 = vmatpush1.msra.mxu0 %v970
    %972 = vmatprep.subr.mxu0 0.0
    %v973 = vand.u32 %v145, 4294901760
    %v974 = vsub.f32 %v145, %v973
    %v975 = vand.u32 %v974, 4294901760
    %v976 = vsub.f32 %v974, %v975
    %v977 = vand.u32 %v976, 4294901760
    %978 = vmatpush1.msra.mxu0 %v977
    %979 = vmatprep.subr.mxu0 0.0
    %v980 = vand.u32 %v146, 4294901760
    %v981 = vsub.f32 %v146, %v980
    %v982 = vand.u32 %v981, 4294901760
    %v983 = vsub.f32 %v981, %v982
    %v984 = vand.u32 %v983, 4294901760
    %985 = vmatpush1.msra.mxu0 %v984
    %986 = vmatprep.subr.mxu0 0.0
    %v987 = vand.u32 %v147, 4294901760
    %v988 = vsub.f32 %v147, %v987
    %v989 = vand.u32 %v988, 4294901760
    %v990 = vsub.f32 %v988, %v989
    %v991 = vand.u32 %v990, 4294901760
    %992 = vmatpush1.msra.mxu0 %v991
    %993 = vmatprep.subr.mxu0 0.0
    %994 = vmatpush1.msra.mxu0 0.0
    %995 = vmatprep.subr.mxu0 0.0
    %996 = vmatpush1.msra.mxu0 0.0
    %997 = vmatprep.subr.mxu0 0.0
    %998 = vmatpush1.msra.mxu0 0.0
    %999 = vmatprep.subr.mxu0 0.0
    %1000 = vmatpush1.msra.mxu0 0.0
    %1001 = vmatprep.subr.mxu0 0.0
    %1002 = vmatpush1.msra.mxu0 0.0
    %1003 = vmatprep.subr.mxu0 0.0
    %1004 = vmatpush1.msra.mxu0 0.0
    %1005 = vmatprep.subr.mxu0 0.0
    %1006 = vmatpush1.msra.mxu0 0.0
    %1007 = vmatprep.subr.mxu0 0.0
    %1008 = vmatpush1.msra.mxu0 0.0
    %1009 = vmatprep.subr.mxu0 0.0
    %1010 = vmatpush1.msra.mxu0 0.0
    %1011 = vmatprep.subr.mxu0 0.0
    %1012 = vmatpush1.msra.mxu0 0.0
    %1013 = vmatprep.subr.mxu0 0.0
    %1014 = vmatpush1.msra.mxu0 0.0
    %1015 = vmatprep.subr.mxu0 0.0
    %1016 = vmatpush1.msra.mxu0 0.0
    %1017 = vmatprep.subr.mxu0 0.0
    %1018 = vmatpush1.msra.mxu0 0.0
    %1019 = vmatprep.subr.mxu0 0.0
    %1020 = vmatpush1.msra.mxu0 0.0
    %1021 = vmatprep.subr.mxu0 0.0
    %1022 = vmatpush1.msra.mxu0 0.0
    %1023 = vmatprep.subr.mxu0 0.0
    %1024 = vmatpush1.msra.mxu0 0.0
    %1025 = vmatprep.mubr.f32.mxu0 0.0
    %v1026 = vand.u32 %v789, 4294901760
    %1027 = vmatmul.mubr.f32.gmra.mrb[0].mxu0 %v1026
    %v1028 = vpop.f32.mrb[0].mxu0
    %v1029 = vadd.f32 %v878, %v1028
    %v1030 = vpop.f32.mrb[0].mxu0
    %1031 = vdwg.mxu0
    %1032 = vmatprep.subr.mxu0 0.0
    %v1033 = vand.u32 %v132, 4294901760
    %v1034 = vsub.f32 %v132, %v1033
    %1035 = vmatpush1.msra.mxu0 %v1034
    %1036 = vmatprep.subr.mxu0 0.0
    %v1037 = vand.u32 %v133, 4294901760
    %v1038 = vsub.f32 %v133, %v1037
    %1039 = vmatpush1.msra.mxu0 %v1038
    %1040 = vmatprep.subr.mxu0 0.0
    %v1041 = vand.u32 %v134, 4294901760
    %v1042 = vsub.f32 %v134, %v1041
    %1043 = vmatpush1.msra.mxu0 %v1042
    %1044 = vmatprep.subr.mxu0 0.0
    %v1045 = vand.u32 %v135, 4294901760
    %v1046 = vsub.f32 %v135, %v1045
    %1047 = vmatpush1.msra.mxu0 %v1046
    %1048 = vmatprep.subr.mxu0 0.0
    %v1049 = vand.u32 %v136, 4294901760
    %v1050 = vsub.f32 %v136, %v1049
    %1051 = vmatpush1.msra.mxu0 %v1050
    %1052 = vmatprep.subr.mxu0 0.0
    %v1053 = vand.u32 %v137, 4294901760
    %v1054 = vsub.f32 %v137, %v1053
    %1055 = vmatpush1.msra.mxu0 %v1054
    %1056 = vmatprep.subr.mxu0 0.0
    %v1057 = vand.u32 %v138, 4294901760
    %v1058 = vsub.f32 %v138, %v1057
    %1059 = vmatpush1.msra.mxu0 %v1058
    %1060 = vmatprep.subr.mxu0 0.0
    %v1061 = vand.u32 %v139, 4294901760
    %v1062 = vsub.f32 %v139, %v1061
    %1063 = vmatpush1.msra.mxu0 %v1062
    %1064 = vmatprep.subr.mxu0 0.0
    %v1065 = vand.u32 %v140, 4294901760
    %v1066 = vsub.f32 %v140, %v1065
    %1067 = vmatpush1.msra.mxu0 %v1066
    %1068 = vmatprep.subr.mxu0 0.0
    %v1069 = vand.u32 %v141, 4294901760
    %v1070 = vsub.f32 %v141, %v1069
    %1071 = vmatpush1.msra.mxu0 %v1070
    %1072 = vmatprep.subr.mxu0 0.0
    %v1073 = vand.u32 %v142, 4294901760
    %v1074 = vsub.f32 %v142, %v1073
    %1075 = vmatpush1.msra.mxu0 %v1074
    %1076 = vmatprep.subr.mxu0 0.0
    %v1077 = vand.u32 %v143, 4294901760
    %v1078 = vsub.f32 %v143, %v1077
    %1079 = vmatpush1.msra.mxu0 %v1078
    %1080 = vmatprep.subr.mxu0 0.0
    %v1081 = vand.u32 %v144, 4294901760
    %v1082 = vsub.f32 %v144, %v1081
    %1083 = vmatpush1.msra.mxu0 %v1082
    %1084 = vmatprep.subr.mxu0 0.0
    %v1085 = vand.u32 %v145, 4294901760
    %v1086 = vsub.f32 %v145, %v1085
    %1087 = vmatpush1.msra.mxu0 %v1086
    %1088 = vmatprep.subr.mxu0 0.0
    %v1089 = vand.u32 %v146, 4294901760
    %v1090 = vsub.f32 %v146, %v1089
    %1091 = vmatpush1.msra.mxu0 %v1090
    %1092 = vmatprep.subr.mxu0 0.0
    %v1093 = vand.u32 %v147, 4294901760
    %v1094 = vsub.f32 %v147, %v1093
    %1095 = vmatpush1.msra.mxu0 %v1094
    %1096 = vmatprep.subr.mxu0 0.0
    %1097 = vmatpush1.msra.mxu0 0.0
    %1098 = vmatprep.subr.mxu0 0.0
    %1099 = vmatpush1.msra.mxu0 0.0
    %1100 = vmatprep.subr.mxu0 0.0
    %1101 = vmatpush1.msra.mxu0 0.0
    %1102 = vmatprep.subr.mxu0 0.0
    %1103 = vmatpush1.msra.mxu0 0.0
    %1104 = vmatprep.subr.mxu0 0.0
    %1105 = vmatpush1.msra.mxu0 0.0
    %1106 = vmatprep.subr.mxu0 0.0
    %1107 = vmatpush1.msra.mxu0 0.0
    %1108 = vmatprep.subr.mxu0 0.0
    %1109 = vmatpush1.msra.mxu0 0.0
    %1110 = vmatprep.subr.mxu0 0.0
    %1111 = vmatpush1.msra.mxu0 0.0
    %1112 = vmatprep.subr.mxu0 0.0
    %1113 = vmatpush1.msra.mxu0 0.0
    %1114 = vmatprep.subr.mxu0 0.0
    %1115 = vmatpush1.msra.mxu0 0.0
    %1116 = vmatprep.subr.mxu0 0.0
    %1117 = vmatpush1.msra.mxu0 0.0
    %1118 = vmatprep.subr.mxu0 0.0
    %1119 = vmatpush1.msra.mxu0 0.0
    %1120 = vmatprep.subr.mxu0 0.0
    %1121 = vmatpush1.msra.mxu0 0.0
    %1122 = vmatprep.subr.mxu0 0.0
    %1123 = vmatpush1.msra.mxu0 0.0
    %1124 = vmatprep.subr.mxu0 0.0
    %1125 = vmatpush1.msra.mxu0 0.0
    %1126 = vmatprep.subr.mxu0 0.0
    %1127 = vmatpush1.msra.mxu0 0.0
    %1128 = vmatprep.mubr.f32.mxu0 0.0
    %v1129 = vand.u32 %v789, 4294901760
    %v1130 = vsub.f32 %v789, %v1129
    %1131 = vmatmul.mubr.f32.gmra.mrb[0].mxu0 %v1130
    %v1132 = vpop.f32.mrb[0].mxu0
    %v1133 = vadd.f32 %v1029, %v1132
    %v1134 = vpop.f32.mrb[0].mxu0
    %1135 = vdwg.mxu0
    %1136 = vmatprep.subr.mxu0 0.0
    %v1137 = vand.u32 %v132, 4294901760
    %1138 = vmatpush1.msra.mxu0 %v1137
    %1139 = vmatprep.subr.mxu0 0.0
    %v1140 = vand.u32 %v133, 4294901760
    %1141 = vmatpush1.msra.mxu0 %v1140
    %1142 = vmatprep.subr.mxu0 0.0
    %v1143 = vand.u32 %v134, 4294901760
    %1144 = vmatpush1.msra.mxu0 %v1143
    %1145 = vmatprep.subr.mxu0 0.0
    %v1146 = vand.u32 %v135, 4294901760
    %1147 = vmatpush1.msra.mxu0 %v1146
    %1148 = vmatprep.subr.mxu0 0.0
    %v1149 = vand.u32 %v136, 4294901760
    %1150 = vmatpush1.msra.mxu0 %v1149
    %1151 = vmatprep.subr.mxu0 0.0
    %v1152 = vand.u32 %v137, 4294901760
    %1153 = vmatpush1.msra.mxu0 %v1152
    %1154 = vmatprep.subr.mxu0 0.0
    %v1155 = vand.u32 %v138, 4294901760
    %1156 = vmatpush1.msra.mxu0 %v1155
    %1157 = vmatprep.subr.mxu0 0.0
    %v1158 = vand.u32 %v139, 4294901760
    %1159 = vmatpush1.msra.mxu0 %v1158
    %1160 = vmatprep.subr.mxu0 0.0
    %v1161 = vand.u32 %v140, 4294901760
    %1162 = vmatpush1.msra.mxu0 %v1161
    %1163 = vmatprep.subr.mxu0 0.0
    %v1164 = vand.u32 %v141, 4294901760
    %1165 = vmatpush1.msra.mxu0 %v1164
    %1166 = vmatprep.subr.mxu0 0.0
    %v1167 = vand.u32 %v142, 4294901760
    %1168 = vmatpush1.msra.mxu0 %v1167
    %1169 = vmatprep.subr.mxu0 0.0
    %v1170 = vand.u32 %v143, 4294901760
    %1171 = vmatpush1.msra.mxu0 %v1170
    %1172 = vmatprep.subr.mxu0 0.0
    %v1173 = vand.u32 %v144, 4294901760
    %1174 = vmatpush1.msra.mxu0 %v1173
    %1175 = vmatprep.subr.mxu0 0.0
    %v1176 = vand.u32 %v145, 4294901760
    %1177 = vmatpush1.msra.mxu0 %v1176
    %1178 = vmatprep.subr.mxu0 0.0
    %v1179 = vand.u32 %v146, 4294901760
    %1180 = vmatpush1.msra.mxu0 %v1179
    %1181 = vmatprep.subr.mxu0 0.0
    %v1182 = vand.u32 %v147, 4294901760
    %1183 = vmatpush1.msra.mxu0 %v1182
    %1184 = vmatprep.subr.mxu0 0.0
    %1185 = vmatpush1.msra.mxu0 0.0
    %1186 = vmatprep.subr.mxu0 0.0
    %1187 = vmatpush1.msra.mxu0 0.0
    %1188 = vmatprep.subr.mxu0 0.0
    %1189 = vmatpush1.msra.mxu0 0.0
    %1190 = vmatprep.subr.mxu0 0.0
    %1191 = vmatpush1.msra.mxu0 0.0
    %1192 = vmatprep.subr.mxu0 0.0
    %1193 = vmatpush1.msra.mxu0 0.0
    %1194 = vmatprep.subr.mxu0 0.0
    %1195 = vmatpush1.msra.mxu0 0.0
    %1196 = vmatprep.subr.mxu0 0.0
    %1197 = vmatpush1.msra.mxu0 0.0
    %1198 = vmatprep.subr.mxu0 0.0
    %1199 = vmatpush1.msra.mxu0 0.0
    %1200 = vmatprep.subr.mxu0 0.0
    %1201 = vmatpush1.msra.mxu0 0.0
    %1202 = vmatprep.subr.mxu0 0.0
    %1203 = vmatpush1.msra.mxu0 0.0
    %1204 = vmatprep.subr.mxu0 0.0
    %1205 = vmatpush1.msra.mxu0 0.0
    %1206 = vmatprep.subr.mxu0 0.0
    %1207 = vmatpush1.msra.mxu0 0.0
    %1208 = vmatprep.subr.mxu0 0.0
    %1209 = vmatpush1.msra.mxu0 0.0
    %1210 = vmatprep.subr.mxu0 0.0
    %1211 = vmatpush1.msra.mxu0 0.0
    %1212 = vmatprep.subr.mxu0 0.0
    %1213 = vmatpush1.msra.mxu0 0.0
    %1214 = vmatprep.subr.mxu0 0.0
    %1215 = vmatpush1.msra.mxu0 0.0
    %1216 = vmatprep.mubr.f32.mxu0 0.0
    %v1217 = vand.u32 %v789, 4294901760
    %v1218 = vsub.f32 %v789, %v1217
    %v1219 = vand.u32 %v1218, 4294901760
    %1220 = vmatmul.mubr.f32.gmra.mrb[0].mxu0 %v1219
    %v1221 = vpop.f32.mrb[0].mxu0
    %v1222 = vadd.f32 %v1133, %v1221
    %v1223 = vpop.f32.mrb[0].mxu0
    %1224 = vdwg.mxu0
    %1225 = vmatprep.subr.mxu0 0.0
    %v1226 = vand.u32 %v132, 4294901760
    %v1227 = vsub.f32 %v132, %v1226
    %v1228 = vand.u32 %v1227, 4294901760
    %1229 = vmatpush1.msra.mxu0 %v1228
    %1230 = vmatprep.subr.mxu0 0.0
    %v1231 = vand.u32 %v133, 4294901760
    %v1232 = vsub.f32 %v133, %v1231
    %v1233 = vand.u32 %v1232, 4294901760
    %1234 = vmatpush1.msra.mxu0 %v1233
    %1235 = vmatprep.subr.mxu0 0.0
    %v1236 = vand.u32 %v134, 4294901760
    %v1237 = vsub.f32 %v134, %v1236
    %v1238 = vand.u32 %v1237, 4294901760
    %1239 = vmatpush1.msra.mxu0 %v1238
    %1240 = vmatprep.subr.mxu0 0.0
    %v1241 = vand.u32 %v135, 4294901760
    %v1242 = vsub.f32 %v135, %v1241
    %v1243 = vand.u32 %v1242, 4294901760
    %1244 = vmatpush1.msra.mxu0 %v1243
    %1245 = vmatprep.subr.mxu0 0.0
    %v1246 = vand.u32 %v136, 4294901760
    %v1247 = vsub.f32 %v136, %v1246
    %v1248 = vand.u32 %v1247, 4294901760
    %1249 = vmatpush1.msra.mxu0 %v1248
    %1250 = vmatprep.subr.mxu0 0.0
    %v1251 = vand.u32 %v137, 4294901760
    %v1252 = vsub.f32 %v137, %v1251
    %v1253 = vand.u32 %v1252, 4294901760
    %1254 = vmatpush1.msra.mxu0 %v1253
    %1255 = vmatprep.subr.mxu0 0.0
    %v1256 = vand.u32 %v138, 4294901760
    %v1257 = vsub.f32 %v138, %v1256
    %v1258 = vand.u32 %v1257, 4294901760
    %1259 = vmatpush1.msra.mxu0 %v1258
    %1260 = vmatprep.subr.mxu0 0.0
    %v1261 = vand.u32 %v139, 4294901760
    %v1262 = vsub.f32 %v139, %v1261
    %v1263 = vand.u32 %v1262, 4294901760
    %1264 = vmatpush1.msra.mxu0 %v1263
    %1265 = vmatprep.subr.mxu0 0.0
    %v1266 = vand.u32 %v140, 4294901760
    %v1267 = vsub.f32 %v140, %v1266
    %v1268 = vand.u32 %v1267, 4294901760
    %1269 = vmatpush1.msra.mxu0 %v1268
    %1270 = vmatprep.subr.mxu0 0.0
    %v1271 = vand.u32 %v141, 4294901760
    %v1272 = vsub.f32 %v141, %v1271
    %v1273 = vand.u32 %v1272, 4294901760
    %1274 = vmatpush1.msra.mxu0 %v1273
    %1275 = vmatprep.subr.mxu0 0.0
    %v1276 = vand.u32 %v142, 4294901760
    %v1277 = vsub.f32 %v142, %v1276
    %v1278 = vand.u32 %v1277, 4294901760
    %1279 = vmatpush1.msra.mxu0 %v1278
    %1280 = vmatprep.subr.mxu0 0.0
    %v1281 = vand.u32 %v143, 4294901760
    %v1282 = vsub.f32 %v143, %v1281
    %v1283 = vand.u32 %v1282, 4294901760
    %1284 = vmatpush1.msra.mxu0 %v1283
    %1285 = vmatprep.subr.mxu0 0.0
    %v1286 = vand.u32 %v144, 4294901760
    %v1287 = vsub.f32 %v144, %v1286
    %v1288 = vand.u32 %v1287, 4294901760
    %1289 = vmatpush1.msra.mxu0 %v1288
    %1290 = vmatprep.subr.mxu0 0.0
    %v1291 = vand.u32 %v145, 4294901760
    %v1292 = vsub.f32 %v145, %v1291
    %v1293 = vand.u32 %v1292, 4294901760
    %1294 = vmatpush1.msra.mxu0 %v1293
    %1295 = vmatprep.subr.mxu0 0.0
    %v1296 = vand.u32 %v146, 4294901760
    %v1297 = vsub.f32 %v146, %v1296
    %v1298 = vand.u32 %v1297, 4294901760
    %1299 = vmatpush1.msra.mxu0 %v1298
    %1300 = vmatprep.subr.mxu0 0.0
    %v1301 = vand.u32 %v147, 4294901760
    %v1302 = vsub.f32 %v147, %v1301
    %v1303 = vand.u32 %v1302, 4294901760
    %1304 = vmatpush1.msra.mxu0 %v1303
    %1305 = vmatprep.subr.mxu0 0.0
    %1306 = vmatpush1.msra.mxu0 0.0
    %1307 = vmatprep.subr.mxu0 0.0
    %1308 = vmatpush1.msra.mxu0 0.0
    %1309 = vmatprep.subr.mxu0 0.0
    %1310 = vmatpush1.msra.mxu0 0.0
    %1311 = vmatprep.subr.mxu0 0.0
    %1312 = vmatpush1.msra.mxu0 0.0
    %1313 = vmatprep.subr.mxu0 0.0
    %1314 = vmatpush1.msra.mxu0 0.0
    %1315 = vmatprep.subr.mxu0 0.0
    %1316 = vmatpush1.msra.mxu0 0.0
    %1317 = vmatprep.subr.mxu0 0.0
    %1318 = vmatpush1.msra.mxu0 0.0
    %1319 = vmatprep.subr.mxu0 0.0
    %1320 = vmatpush1.msra.mxu0 0.0
    %1321 = vmatprep.subr.mxu0 0.0
    %1322 = vmatpush1.msra.mxu0 0.0
    %1323 = vmatprep.subr.mxu0 0.0
    %1324 = vmatpush1.msra.mxu0 0.0
    %1325 = vmatprep.subr.mxu0 0.0
    %1326 = vmatpush1.msra.mxu0 0.0
    %1327 = vmatprep.subr.mxu0 0.0
    %1328 = vmatpush1.msra.mxu0 0.0
    %1329 = vmatprep.subr.mxu0 0.0
    %1330 = vmatpush1.msra.mxu0 0.0
    %1331 = vmatprep.subr.mxu0 0.0
    %1332 = vmatpush1.msra.mxu0 0.0
    %1333 = vmatprep.subr.mxu0 0.0
    %1334 = vmatpush1.msra.mxu0 0.0
    %1335 = vmatprep.subr.mxu0 0.0
    %1336 = vmatpush1.msra.mxu0 0.0
    %1337 = vmatprep.mubr.f32.mxu0 0.0
    %v1338 = vand.u32 %v789, 4294901760
    %1339 = vmatmul.mubr.f32.gmra.mrb[0].mxu0 %v1338
    %v1340 = vpop.f32.mrb[0].mxu0
    %v1341 = vadd.f32 %v1222, %v1340
    %v1342 = vpop.f32.mrb[0].mxu0
    %1343 = vdwg.mxu0
    %1344 = vmatprep.subr.mxu0 0.0
    %v1345 = vand.u32 %v132, 4294901760
    %1346 = vmatpush1.msra.mxu0 %v1345
    %1347 = vmatprep.subr.mxu0 0.0
    %v1348 = vand.u32 %v133, 4294901760
    %1349 = vmatpush1.msra.mxu0 %v1348
    %1350 = vmatprep.subr.mxu0 0.0
    %v1351 = vand.u32 %v134, 4294901760
    %1352 = vmatpush1.msra.mxu0 %v1351
    %1353 = vmatprep.subr.mxu0 0.0
    %v1354 = vand.u32 %v135, 4294901760
    %1355 = vmatpush1.msra.mxu0 %v1354
    %1356 = vmatprep.subr.mxu0 0.0
    %v1357 = vand.u32 %v136, 4294901760
    %1358 = vmatpush1.msra.mxu0 %v1357
    %1359 = vmatprep.subr.mxu0 0.0
    %v1360 = vand.u32 %v137, 4294901760
    %1361 = vmatpush1.msra.mxu0 %v1360
    %1362 = vmatprep.subr.mxu0 0.0
    %v1363 = vand.u32 %v138, 4294901760
    %1364 = vmatpush1.msra.mxu0 %v1363
    %1365 = vmatprep.subr.mxu0 0.0
    %v1366 = vand.u32 %v139, 4294901760
    %1367 = vmatpush1.msra.mxu0 %v1366
    %1368 = vmatprep.subr.mxu0 0.0
    %v1369 = vand.u32 %v140, 4294901760
    %1370 = vmatpush1.msra.mxu0 %v1369
    %1371 = vmatprep.subr.mxu0 0.0
    %v1372 = vand.u32 %v141, 4294901760
    %1373 = vmatpush1.msra.mxu0 %v1372
    %1374 = vmatprep.subr.mxu0 0.0
    %v1375 = vand.u32 %v142, 4294901760
    %1376 = vmatpush1.msra.mxu0 %v1375
    %1377 = vmatprep.subr.mxu0 0.0
    %v1378 = vand.u32 %v143, 4294901760
    %1379 = vmatpush1.msra.mxu0 %v1378
    %1380 = vmatprep.subr.mxu0 0.0
    %v1381 = vand.u32 %v144, 4294901760
    %1382 = vmatpush1.msra.mxu0 %v1381
    %1383 = vmatprep.subr.mxu0 0.0
    %v1384 = vand.u32 %v145, 4294901760
    %1385 = vmatpush1.msra.mxu0 %v1384
    %1386 = vmatprep.subr.mxu0 0.0
    %v1387 = vand.u32 %v146, 4294901760
    %1388 = vmatpush1.msra.mxu0 %v1387
    %1389 = vmatprep.subr.mxu0 0.0
    %v1390 = vand.u32 %v147, 4294901760
    %1391 = vmatpush1.msra.mxu0 %v1390
    %1392 = vmatprep.subr.mxu0 0.0
    %1393 = vmatpush1.msra.mxu0 0.0
    %1394 = vmatprep.subr.mxu0 0.0
    %1395 = vmatpush1.msra.mxu0 0.0
    %1396 = vmatprep.subr.mxu0 0.0
    %1397 = vmatpush1.msra.mxu0 0.0
    %1398 = vmatprep.subr.mxu0 0.0
    %1399 = vmatpush1.msra.mxu0 0.0
    %1400 = vmatprep.subr.mxu0 0.0
    %1401 = vmatpush1.msra.mxu0 0.0
    %1402 = vmatprep.subr.mxu0 0.0
    %1403 = vmatpush1.msra.mxu0 0.0
    %1404 = vmatprep.subr.mxu0 0.0
    %1405 = vmatpush1.msra.mxu0 0.0
    %1406 = vmatprep.subr.mxu0 0.0
    %1407 = vmatpush1.msra.mxu0 0.0
    %1408 = vmatprep.subr.mxu0 0.0
    %1409 = vmatpush1.msra.mxu0 0.0
    %1410 = vmatprep.subr.mxu0 0.0
    %1411 = vmatpush1.msra.mxu0 0.0
    %1412 = vmatprep.subr.mxu0 0.0
    %1413 = vmatpush1.msra.mxu0 0.0
    %1414 = vmatprep.subr.mxu0 0.0
    %1415 = vmatpush1.msra.mxu0 0.0
    %1416 = vmatprep.subr.mxu0 0.0
    %1417 = vmatpush1.msra.mxu0 0.0
    %1418 = vmatprep.subr.mxu0 0.0
    %1419 = vmatpush1.msra.mxu0 0.0
    %1420 = vmatprep.subr.mxu0 0.0
    %1421 = vmatpush1.msra.mxu0 0.0
    %1422 = vmatprep.subr.mxu0 0.0
    %1423 = vmatpush1.msra.mxu0 0.0
    %1424 = vmatprep.mubr.f32.mxu0 0.0
    %v1425 = vand.u32 %v789, 4294901760
    %1426 = vmatmul.mubr.f32.gmra.mrb[0].mxu0 %v1425
    %v1427 = vpop.f32.mrb[0].mxu0
    %v1428 = vadd.f32 %v1341, %v1427
    %v1429 = vpop.f32.mrb[0].mxu0
    %1430 = vdwg.mxu0
    %v1431 = vrcp.pop %v786
    %v1432 = vmul.f32 %v1428, %v1431
    %s1433 = sadd.s32 0, 0
    %s1434 = smul.u32 %s1433, 8
    %v1435 = vlaneseq
    %v1436 = vshrl.u32 %v1435, 7
    %v1437 = vstv %s1434
    %v1438 = vadd.s32 %v1436, %v1437
    %vm1439 = vcmp.lt.s32.totalorder %v1438, 8
    %v1440 = vld [vmem:[#allocation2] sm:$0xff]
    %v1441 = vsel %vm1439, 1, 0
    %vm1442 = vcmp.eq.s32.totalorder %v1441, 1
    %v1443 = vsel %vm1442, %v1432, 0.0
    %v1444 = vadd.f32 %v1440, %v1443
    %vm1445 = vcmask 31744
    %1446 = vst.msk [vmem:[#allocation2] sm:$0xff] %vm1445, %v1444
    // Predicated region
    $region18: #{tpu_custom_call.1} parent=1 // pred_check
      %p1447 = pneg %p69
    $region19: #{tpu_custom_call.1} parent=1 // pred_check_branch
      %1449 = sbr.rel (%p1447) target = $region21
    $region20: #{tpu_custom_call.1} parent=1 // pred_region
      %v1450 = vld [vmem:[#allocation2] sm:$0xff]
      %v1451 = vsel %vm1445, %v1450, 0.0
      %1452 = vadd.xlane.f32.xlu0 %v1451
      %v1453 = vpop.xlane.xlu0 %1452
      %v1454 = vrot.slane %v1453, 4
      %v1455 = vadd.f32 %v1453, %v1454
      %v1456 = vrot.slane %v1455, 2
      %v1457 = vadd.f32 %v1455, %v1456
      %v1458 = vrot.slane %v1457, 1
      %v1459 = vadd.f32 %v1457, %v1458
      %v1460 = vmul.f32 %v1459, 0.03125
      %vm1461 = vcmask 0
      %1462 = vst.msk [vmem:[#allocation3] sm:$0x1] %vm1461, %v1460
    $region21: #{tpu_custom_call.1} parent=1 // pred_fallthru
      _
    // Predicated region
    $region22: #{tpu_custom_call.1} parent=1 // pred_check
      _
    $region23: #{tpu_custom_call.1} parent=1 // pred_check_branch
      %1464 = sbr.rel (0) target = $region25
    $region24: #{tpu_custom_call.1} parent=1 // pred_region
      %s1466 = ssub.s32 16, 16
      %1467 = vsyncadd [#allocation4], %s1466
      %s1469 = sshll.u32 [#allocation3], 4
      %s1470 = int_to_ptr.vmem [resolvable:$true] %s1469
      %1472 = dma.vmem_to_hbm [thread:$0]  %s1470, 16, %s3, [#allocation4]
    $region25: #{tpu_custom_call.1} parent=1 // pred_fallthru
      _
    // Predicated region
    $region26: #{tpu_custom_call.1} parent=1 // pred_check
      _
    $region27: #{tpu_custom_call.1} parent=1 // pred_check_branch
      %1474 = sbr.rel (0) target = $region29
    $region28: #{tpu_custom_call.1} parent=1 // pred_region
      %1475 = dma.done [#allocation4], 16
    $region29: #{tpu_custom_call.1} parent=1 // pred_fallthru
      _
    %1476 = vsyncpa [#allocation4], 1

</llo_original>
